<compile_context>
chip_gen: v7x
topology: tpu7x:2x2x1
jax: 0.10.0
libtpu: 0.0.40
codegen_flags: <defaults>
</compile_context>

<pallas_src>
import functools

import jax
import jax.numpy as jnp
from jax.experimental import pallas as pl
from jax.experimental.pallas import tpu as pltpu

LN_EPS = 1e-5
TK_PREF = 2048   # preferred K tile for the layer-1 contraction over repr_dim


def _round_up(x, m):
    return (x + m - 1) // m * m


def _k_tile(repr_dim):
    # K tile: multiple of 128, at most TK_PREF.
    return min(TK_PREF, _round_up(repr_dim, 128))


def _padded_dims(repr_dim, feature_dim, hidden_dim, action_dim):
    tk = _k_tile(repr_dim)
    Rp = _round_up(repr_dim, tk)        # no ragged K tile
    Fp = _round_up(feature_dim, 128)
    Hp = _round_up(hidden_dim, 128)
    Ap = _round_up(action_dim, 128)
    return Rp, Fp, Hp, Ap


# --------------------------------------------------------------------------
# Kernel
# --------------------------------------------------------------------------
def actor_kernel(obs_ref,                                   # [TB, TK] bf16
                 w1_ref,                                    # [TK, Fp] bf16
                 b1_ref, g_ref, beta_ref,                   # [1, Fp]  f32
                 w2_ref, b2_ref, w3_ref, b3_ref, w4_ref, b4_ref,
                 mu_ref,                                    # [TB, Ap] f32 out
                 h_acc_ref,                                 # [TB, Fp] f32 scratch
                 *, feature_dim):
    """Grid: (batch tiles [parallel], K tiles of layer-1 [arbitrary])."""
    k = pl.program_id(1)

    @pl.when(k == 0)
    def _():
        h_acc_ref[...] = jnp.zeros_like(h_acc_ref)

    # Layer 1, K-tiled: stream obs / w1 tiles, accumulate in f32.
    h_acc_ref[...] += jnp.dot(obs_ref[...], w1_ref[...],
                              preferred_element_type=jnp.float32)

    @pl.when(k == pl.num_programs(1) - 1)
    def _():
        h = h_acc_ref[...] + b1_ref[...]

        # LayerNorm over the *true* feature_dim.  Padded lanes of h are
        # exactly 0 (w1/b1 padded columns are 0), so they add nothing to the
        # mean; the lane mask keeps them out of the (two-pass) variance too.
        fp = h.shape[-1]
        inv_n = 1.0 / float(feature_dim)
        lane = jax.lax.broadcasted_iota(jnp.int32, (1, fp), 1)
        mask = (lane < feature_dim).astype(jnp.float32)
        mean = jnp.sum(h, axis=-1, keepdims=True) * inv_n
        centered = (h - mean) * mask
        var = jnp.sum(centered * centered, axis=-1, keepdims=True) * inv_n
        hn = centered * jax.lax.rsqrt(var + LN_EPS)
        hn = hn * g_ref[...] + beta_ref[...]        # padded lanes stay 0
        hn = jnp.tanh(hn)

        # Policy MLP (bf16 MXU inputs, f32 accumulation).
        z = jnp.dot(hn.astype(jnp.bfloat16), w2_ref[...],
                    preferred_element_type=jnp.float32) + b2_ref[...]
        z = jnp.maximum(z, 0.0)
        z = jnp.dot(z.astype(jnp.bfloat16), w3_ref[...],
                    preferred_element_type=jnp.float32) + b3_ref[...]
        z = jnp.maximum(z, 0.0)
        mu = jnp.dot(z.astype(jnp.bfloat16), w4_ref[...],
                     preferred_element_type=jnp.float32) + b4_ref[...]
        mu_ref[...] = jnp.tanh(mu)                  # lane-dense store


# --------------------------------------------------------------------------
# Wrapper
# --------------------------------------------------------------------------
def prepare_obs(obs, rp):
    """Pad obs (rows -> multiple of 8, cols -> Rp) and cast to bf16.

    Do this ONCE upstream (where the encoder writes obs) so the actor never
    pays a separate pad/cast pass over its largest input per call.
    """
    B, R = obs.shape
    Bp = _round_up(max(B, 1), 8)
    return jnp.pad(obs, ((0, Bp - B), (0, rp - R))).astype(jnp.bfloat16)


def actor_forward(obs, std_scalar, packed, *, feature_dim, action_dim,
                  batch=None, block_b=256):
    """Fused Actor forward.  Returns (mu, std), each [batch, action_dim].

    `obs` may be pre-padded bf16 of shape [Bp, Rp] (preferred; see
    prepare_obs) or raw f32 [B, repr_dim] (padded/cast here as a fallback).
    """
    Rp, Fp = packed["w1"].shape
    Hp = packed["w3"].shape[0]
    Ap = packed["w4"].shape[1]

    if (obs.dtype == jnp.bfloat16 and obs.shape[1] == Rp
            and obs.shape[0] % 8 == 0):
        obs_p = obs
        B = obs.shape[0] if batch is None else batch
    else:
        B = obs.shape[0] if batch is None else batch
        obs_p = prepare_obs(obs, Rp)
    Bp = obs_p.shape[0]

    # Batch tile: multiple of 8 that divides Bp; 256 feeds the 256x256 MXU
    # on v6e/v7x.  If the batch grid would have a single step, split it so
    # both v7x TensorCores get work.
    TB = min(block_b, Bp)
    while Bp % TB:
        TB -= 8
    if Bp // TB < 2 and Bp % 16 == 0:
        TB = Bp // 2

    # K tile for layer 1 (Rp was padded to a multiple of it).
    TK = min(TK_PREF, Rp)
    while Rp % TK:
        TK -= 128

    grid = (Bp // TB, Rp // TK)

    def vmem_estimate(weight_bufs):
        pinned_bytes = (3 * Fp * 4                                  # b1, g, beta
                        + (Fp * Hp + Hp * Hp + Hp * Ap) * 2         # w2, w3, w4
                        + (Hp + Hp + Ap) * 4)                       # b2, b3, b4
        return (TB * TK * 2 * 2          # obs tiles (bf16, double buffered)
                + TK * Fp * 2 * 2        # w1 tiles (bf16, double buffered)
                + pinned_bytes * weight_bufs
                + TB * Ap * 4 * 2        # mu output (f32, double buffered)
                + TB * Fp * 4)           # f32 accumulator scratch

    flops = 2 * Bp * (Rp * Fp + Fp * Hp + Hp * Hp + Hp * Ap)
    bytes_accessed = (int(obs_p.size) * 2
                      + sum(int(v.size) * v.dtype.itemsize for v in packed.values())
                      + Bp * Ap * 4)
    cost = pl.CostEstimate(flops=flops, transcendentals=Bp * (Fp + Ap),
                           bytes_accessed=bytes_accessed)

    weights = (packed["w1"], packed["b1"], packed["ln_g"], packed["ln_b"],
               packed["w2"], packed["b2"], packed["w3"], packed["b3"],
               packed["w4"], packed["b4"])

    def run(single_buffer_weights):
        spec_kwargs = ({"pipeline_mode": pl.Buffered(1)}
                       if single_buffer_weights else {})

        def pinned(arr):
            # Constant index map -> DMA'd once, stays VMEM-resident.
            return pl.BlockSpec(arr.shape, lambda i, k: (0, 0), **spec_kwargs)

        est = vmem_estimate(1 if single_buffer_weights else 2)
        vmem_limit = int(min(max(2 * est, 32 * 1024 * 1024), 48 * 1024 * 1024))

        return pl.pallas_call(
            functools.partial(actor_kernel, feature_dim=feature_dim),
            out_shape=jax.ShapeDtypeStruct((Bp, Ap), jnp.float32),
            grid_spec=pltpu.PrefetchScalarGridSpec(
                num_scalar_prefetch=0,
                grid=grid,
                in_specs=[
                    pl.BlockSpec((TB, TK), lambda i, k: (i, k)),   # obs tile
                    pl.BlockSpec((TK, Fp), lambda i, k: (k, 0)),   # w1 K tile
                    pinned(packed["b1"]), pinned(packed["ln_g"]),
                    pinned(packed["ln_b"]),
                    pinned(packed["w2"]), pinned(packed["b2"]),
                    pinned(packed["w3"]), pinned(packed["b3"]),
                    pinned(packed["w4"]), pinned(packed["b4"]),
                ],
                out_specs=pl.BlockSpec((TB, Ap), lambda i, k: (i, 0)),
                scratch_shapes=[pltpu.VMEM((TB, Fp), jnp.float32)]),
            compiler_params=pltpu.CompilerParams(
                dimension_semantics=("parallel", "arbitrary"),
                vmem_limit_bytes=vmem_limit),
            cost_estimate=cost,
        )(obs_p, *weights)

    try:
        mu_pad = run(single_buffer_weights=True)
    except Exception:
        # pl.Buffered(1) not supported on this jax version -> default buffering.
        mu_pad = run(single_buffer_weights=False)

    mu = mu_pad[:B, :action_dim]
    # std = torch.ones_like(mu) * std -> pure constant, built in the wrapper.
    std = jnp.full((B, action_dim), std_scalar, dtype=mu.dtype)
    return mu, std


# --------------------------------------------------------------------------
# Params
# --------------------------------------------------------------------------
def init_params(key, repr_dim, feature_dim, hidden_dim, action_dim):
    ks = jax.random.split(key, 4)

    def lin(k, fan_in, fan_out):
        # deterministic synthetic init (stand-in for orthogonal weight_init)
        w = jax.random.normal(k, (fan_in, fan_out), jnp.float32) / jnp.sqrt(fan_in)
        b = jnp.zeros((1, fan_out), jnp.float32)
        return w, b

    w1, b1 = lin(ks[0], repr_dim, feature_dim)
    w2, b2 = lin(ks[1], feature_dim, hidden_dim)
    w3, b3 = lin(ks[2], hidden_dim, hidden_dim)
    w4, b4 = lin(ks[3], hidden_dim, action_dim)
    return dict(
        w1=w1, b1=b1,
        ln_g=jnp.ones((1, feature_dim), jnp.float32),   # LayerNorm weight
        ln_b=jnp.zeros((1, feature_dim), jnp.float32),  # LayerNorm bias
        w2=w2, b2=b2, w3=w3, b3=b3, w4=w4, b4=b4,
    )


def pack_params(p, repr_dim, feature_dim, hidden_dim, action_dim):
    """Zero-pad dims (repr_dim -> multiple of the K tile, others -> 128);
    weights -> bf16, bias/LN vectors -> f32."""
    Rp, Fp, Hp, Ap = _padded_dims(repr_dim, feature_dim, hidden_dim, action_dim)

    def pad2(a, r, c, dtype):
        return jnp.pad(a, ((0, r - a.shape[0]), (0, c - a.shape[1]))).astype(dtype)

    packed = dict(
        w1=pad2(p["w1"], Rp, Fp, jnp.bfloat16),
        b1=pad2(p["b1"], 1, Fp, jnp.float32),
        ln_g=pad2(p["ln_g"], 1, Fp, jnp.float32),
        ln_b=pad2(p["ln_b"], 1, Fp, jnp.float32),
        w2=pad2(p["w2"], Fp, Hp, jnp.bfloat16),
        b2=pad2(p["b2"], 1, Hp, jnp.float32),
        w3=pad2(p["w3"], Hp, Hp, jnp.bfloat16),
        b3=pad2(p["b3"], 1, Hp, jnp.float32),
        w4=pad2(p["w4"], Hp, Ap, jnp.bfloat16),
        b4=pad2(p["b4"], 1, Ap, jnp.float32),
    )

    # The kernel's padded-lane reasoning depends on these padded lanes being 0.
    for name in ("b1", "ln_g", "ln_b"):
        pad_part = packed[name][:, feature_dim:]
        assert pad_part.size == 0 or not bool(jnp.any(pad_part != 0)), (
            f"padded lanes of {name} must be exactly zero")
    return packed


# --------------------------------------------------------------------------
# Reference (same bf16-quantized inputs the kernel sees)
# --------------------------------------------------------------------------
def actor_reference(obs, std_scalar, p):
    q = lambda a: a.astype(jnp.bfloat16).astype(jnp.float32)
    x = q(obs)
    h = x @ q(p["w1"]) + p["b1"]
    mean = h.mean(-1, keepdims=True)
    var = ((h - mean) ** 2).mean(-1, keepdims=True)
    h = (h - mean) / jnp.sqrt(var + LN_EPS) * p["ln_g"] + p["ln_b"]
    h = jnp.tanh(h)
    h = jnp.maximum(h @ q(p["w2"]) + p["b2"], 0.0)
    h = jnp.maximum(h @ q(p["w3"]) + p["b3"], 0.0)
    mu = jnp.tanh(h @ q(p["w4"]) + p["b4"])
    return mu, jnp.full_like(mu, std_scalar)


if __name__ == "__main__":
    B, repr_dim, feature_dim, hidden_dim, action_dim = 2, 64, 32, 32, 4

    key = jax.random.PRNGKey(0)
    k_obs, k_par = jax.random.split(key)
    obs = jax.random.normal(k_obs, (B, repr_dim), jnp.float32)
    params = init_params(k_par, repr_dim, feature_dim, hidden_dim, action_dim)
    packed = pack_params(params, repr_dim, feature_dim, hidden_dim, action_dim)
    std_scalar = 0.2

    # Pad + cast obs to bf16 once (would live next to the encoder in training).
    obs_p = prepare_obs(obs, packed["w1"].shape[0])

    mu, std = actor_forward(obs_p, std_scalar, packed, batch=B,
                            feature_dim=feature_dim, action_dim=action_dim)
    mu, std = jax.block_until_ready((mu, std))

    mu_ref, std_ref = actor_reference(obs, std_scalar, params)
    assert mu.shape == (B, action_dim) and std.shape == (B, action_dim)
    assert jnp.allclose(mu, mu_ref, atol=2e-2), "mu mismatch vs reference"
    assert jnp.allclose(std, std_ref, atol=1e-6), "std mismatch vs reference"

    print("KERNEL_OK")
</pallas_src>

<mosaic_0001>
module attributes {stable_mosaic.version = 11 : i64} {
  func.func @actor_kernel(%arg0: i32, %arg1: i32, %arg2: memref<8x128xbf16, #tpu.memory_space<vmem>>, %arg3: memref<128x128xbf16, #tpu.memory_space<vmem>>, %arg4: memref<1x128xf32, #tpu.memory_space<vmem>>, %arg5: memref<1x128xf32, #tpu.memory_space<vmem>>, %arg6: memref<1x128xf32, #tpu.memory_space<vmem>>, %arg7: memref<128x128xbf16, #tpu.memory_space<vmem>>, %arg8: memref<1x128xf32, #tpu.memory_space<vmem>>, %arg9: memref<128x128xbf16, #tpu.memory_space<vmem>>, %arg10: memref<1x128xf32, #tpu.memory_space<vmem>>, %arg11: memref<128x128xbf16, #tpu.memory_space<vmem>>, %arg12: memref<1x128xf32, #tpu.memory_space<vmem>>, %arg13: memref<8x128xf32, #tpu.memory_space<vmem>>, %arg14: memref<8x128xf32, #tpu.memory_space<vmem>>) attributes {dimension_semantics = [#tpu.dimension_semantics<parallel>, #tpu.dimension_semantics<arbitrary>], iteration_bounds = array<i64: 1, 1>, scalar_prefetch = 0 : i64, scratch_operands = 1 : i64, tpu.core_type = #tpu.core_type<tc>, window_params = [{transform_indices = @transform_0, window_bounds = array<i64: 8, 128>}, {transform_indices = @transform_1, window_bounds = array<i64: 128, 128>}, {pipeline_mode = #tpu.pipeline_mode<synchronous>, transform_indices = @transform_2, window_bounds = array<i64: 1, 128>}, {pipeline_mode = #tpu.pipeline_mode<synchronous>, transform_indices = @transform_3, window_bounds = array<i64: 1, 128>}, {pipeline_mode = #tpu.pipeline_mode<synchronous>, transform_indices = @transform_4, window_bounds = array<i64: 1, 128>}, {pipeline_mode = #tpu.pipeline_mode<synchronous>, transform_indices = @transform_5, window_bounds = array<i64: 128, 128>}, {pipeline_mode = #tpu.pipeline_mode<synchronous>, transform_indices = @transform_6, window_bounds = array<i64: 1, 128>}, {pipeline_mode = #tpu.pipeline_mode<synchronous>, transform_indices = @transform_7, window_bounds = array<i64: 128, 128>}, {pipeline_mode = #tpu.pipeline_mode<synchronous>, transform_indices = @transform_8, window_bounds = array<i64: 1, 128>}, {pipeline_mode = #tpu.pipeline_mode<synchronous>, transform_indices = @transform_9, window_bounds = array<i64: 128, 128>}, {pipeline_mode = #tpu.pipeline_mode<synchronous>, transform_indices = @transform_10, window_bounds = array<i64: 1, 128>}, {transform_indices = @transform_11, window_bounds = array<i64: 8, 128>}]} {
    %c0_i32 = arith.constant 0 : i32
    %0 = arith.cmpi eq, %arg1, %c0_i32 : i32
    %1 = arith.extui %0 : i1 to i32
    %c0_i32_0 = arith.constant 0 : i32
    %2 = arith.cmpi ne, %1, %c0_i32_0 : i32
    scf.if %2 {
      %cst_10 = arith.constant 0.000000e+00 : f32
      %12 = vector.broadcast %cst_10 : f32 to vector<8x128xf32>
      %c0_11 = arith.constant 0 : index
      %c0_12 = arith.constant 0 : index
      %13 = vector.load %arg14[%c0_11, %c0_12] : memref<8x128xf32, #tpu.memory_space<vmem>>, vector<8x128xf32>
      tpu.vector_store %arg14[%c0_11, %c0_12], %12 {strides = array<i32>} : memref<8x128xf32, #tpu.memory_space<vmem>>, vector<8x128xf32>,
    } else {
    }
    %c0 = arith.constant 0 : index
    %c0_1 = arith.constant 0 : index
    %3 = vector.load %arg14[%c0, %c0_1] : memref<8x128xf32, #tpu.memory_space<vmem>>, vector<8x128xf32>
    %c0_2 = arith.constant 0 : index
    %c0_3 = arith.constant 0 : index
    %4 = vector.load %arg2[%c0_2, %c0_3] : memref<8x128xbf16, #tpu.memory_space<vmem>>, vector<8x128xbf16>
    %c0_4 = arith.constant 0 : index
    %c0_5 = arith.constant 0 : index
    %5 = vector.load %arg3[%c0_4, %c0_5] : memref<128x128xbf16, #tpu.memory_space<vmem>>, vector<128x128xbf16>
    %cst = arith.constant dense<0.000000e+00> : vector<8x128xf32>
    %6 = tpu.matmul %4, %5, %cst {dimension_numbers = #tpu.dot_dimension_numbers<[1], [0], [0], [1], [0, 0, 1, 1], [], []>} : vector<8x128xbf16>, vector<128x128xbf16>, vector<8x128xf32> -> vector<8x128xf32>
    %7 = arith.addf %3, %6 : vector<8x128xf32>
    %c0_6 = arith.constant 0 : index
    %c0_7 = arith.constant 0 : index
    %8 = vector.load %arg14[%c0_6, %c0_7] : memref<8x128xf32, #tpu.memory_space<vmem>>, vector<8x128xf32>
    tpu.vector_store %arg14[%c0_6, %c0_7], %7 {strides = array<i32>} : memref<8x128xf32, #tpu.memory_space<vmem>>, vector<8x128xf32>,
    %c0_i32_8 = arith.constant 0 : i32
    %9 = arith.cmpi eq, %arg1, %c0_i32_8 : i32
    %10 = arith.extui %9 : i1 to i32
    %c0_i32_9 = arith.constant 0 : i32
    %11 = arith.cmpi ne, %10, %c0_i32_9 : i32
    scf.if %11 {
      %c0_10 = arith.constant 0 : index
      %c0_11 = arith.constant 0 : index
      %12 = vector.load %arg14[%c0_10, %c0_11] : memref<8x128xf32, #tpu.memory_space<vmem>>, vector<8x128xf32>
      %c0_12 = arith.constant 0 : index
      %c0_13 = arith.constant 0 : index
      %13 = vector.load %arg4[%c0_12, %c0_13] : memref<1x128xf32, #tpu.memory_space<vmem>>, vector<1x128xf32>
      %14 = vector.broadcast %13 : vector<1x128xf32> to vector<8x128xf32>
      %15 = arith.addf %12, %14 : vector<8x128xf32>
      %16 = tpu.iota {dimensions = array<i32: 1>} : vector<1x128xi32>
      %c32_i32 = arith.constant 32 : i32
      %17 = vector.broadcast %c32_i32 : i32 to vector<1x128xi32>
      %18 = arith.cmpi slt, %16, %17 : vector<1x128xi32>
      %19 = arith.extui %18 : vector<1x128xi1> to vector<1x128xi32>
      %20 = arith.sitofp %19 : vector<1x128xi32> to vector<1x128xf32>
      %cst_14 = arith.constant dense<0.000000e+00> : vector<8xf32>
      %21 = vector.multi_reduction <add>, %15, %cst_14 [1] : vector<8x128xf32> to vector<8xf32>
      %22 = vector.shape_cast %21 : vector<8xf32> to vector<8x1xf32>
      %cst_15 = arith.constant 3.125000e-02 : f32
      %23 = vector.broadcast %cst_15 : f32 to vector<8x1xf32>
      %24 = arith.mulf %22, %23 : vector<8x1xf32>
      %25 = vector.broadcast %24 : vector<8x1xf32> to vector<8x128xf32>
      %26 = arith.subf %15, %25 : vector<8x128xf32>
      %27 = vector.broadcast %20 : vector<1x128xf32> to vector<8x128xf32>
      %28 = arith.mulf %26, %27 : vector<8x128xf32>
      %29 = arith.mulf %28, %28 : vector<8x128xf32>
      %cst_16 = arith.constant dense<0.000000e+00> : vector<8xf32>
      %30 = vector.multi_reduction <add>, %29, %cst_16 [1] : vector<8x128xf32> to vector<8xf32>
      %31 = vector.shape_cast %30 : vector<8xf32> to vector<8x1xf32>
      %cst_17 = arith.constant 3.125000e-02 : f32
      %32 = vector.broadcast %cst_17 : f32 to vector<8x1xf32>
      %33 = arith.mulf %31, %32 : vector<8x1xf32>
      %cst_18 = arith.constant 9.99999974E-6 : f32
      %34 = vector.broadcast %cst_18 : f32 to vector<8x1xf32>
      %35 = arith.addf %33, %34 : vector<8x1xf32>
      %36 = math.rsqrt %35 : vector<8x1xf32>
      %37 = vector.broadcast %36 : vector<8x1xf32> to vector<8x128xf32>
      %38 = arith.mulf %28, %37 : vector<8x128xf32>
      %c0_19 = arith.constant 0 : index
      %c0_20 = arith.constant 0 : index
      %39 = vector.load %arg5[%c0_19, %c0_20] : memref<1x128xf32, #tpu.memory_space<vmem>>, vector<1x128xf32>
      %40 = vector.broadcast %39 : vector<1x128xf32> to vector<8x128xf32>
      %41 = arith.mulf %38, %40 : vector<8x128xf32>
      %c0_21 = arith.constant 0 : index
      %c0_22 = arith.constant 0 : index
      %42 = vector.load %arg6[%c0_21, %c0_22] : memref<1x128xf32, #tpu.memory_space<vmem>>, vector<1x128xf32>
      %43 = vector.broadcast %42 : vector<1x128xf32> to vector<8x128xf32>
      %44 = arith.addf %41, %43 : vector<8x128xf32>
      %45 = math.tanh %44 : vector<8x128xf32>
      %46 = arith.truncf %45 : vector<8x128xf32> to vector<8x128xbf16>
      %c0_23 = arith.constant 0 : index
      %c0_24 = arith.constant 0 : index
      %47 = vector.load %arg7[%c0_23, %c0_24] : memref<128x128xbf16, #tpu.memory_space<vmem>>, vector<128x128xbf16>
      %cst_25 = arith.constant dense<0.000000e+00> : vector<8x128xf32>
      %48 = tpu.matmul %46, %47, %cst_25 {dimension_numbers = #tpu.dot_dimension_numbers<[1], [0], [0], [1], [0, 0, 1, 1], [], []>} : vector<8x128xbf16>, vector<128x128xbf16>, vector<8x128xf32> -> vector<8x128xf32>
      %c0_26 = arith.constant 0 : index
      %c0_27 = arith.constant 0 : index
      %49 = vector.load %arg8[%c0_26, %c0_27] : memref<1x128xf32, #tpu.memory_space<vmem>>, vector<1x128xf32>
      %50 = vector.broadcast %49 : vector<1x128xf32> to vector<8x128xf32>
      %51 = arith.addf %48, %50 : vector<8x128xf32>
      %cst_28 = arith.constant 0.000000e+00 : f32
      %52 = vector.broadcast %cst_28 : f32 to vector<8x128xf32>
      %53 = arith.maximumf %51, %52 : vector<8x128xf32>
      %54 = arith.truncf %53 : vector<8x128xf32> to vector<8x128xbf16>
      %c0_29 = arith.constant 0 : index
      %c0_30 = arith.constant 0 : index
      %55 = vector.load %arg9[%c0_29, %c0_30] : memref<128x128xbf16, #tpu.memory_space<vmem>>, vector<128x128xbf16>
      %cst_31 = arith.constant dense<0.000000e+00> : vector<8x128xf32>
      %56 = tpu.matmul %54, %55, %cst_31 {dimension_numbers = #tpu.dot_dimension_numbers<[1], [0], [0], [1], [0, 0, 1, 1], [], []>} : vector<8x128xbf16>, vector<128x128xbf16>, vector<8x128xf32> -> vector<8x128xf32>
      %c0_32 = arith.constant 0 : index
      %c0_33 = arith.constant 0 : index
      %57 = vector.load %arg10[%c0_32, %c0_33] : memref<1x128xf32, #tpu.memory_space<vmem>>, vector<1x128xf32>
      %58 = vector.broadcast %57 : vector<1x128xf32> to vector<8x128xf32>
      %59 = arith.addf %56, %58 : vector<8x128xf32>
      %cst_34 = arith.constant 0.000000e+00 : f32
      %60 = vector.broadcast %cst_34 : f32 to vector<8x128xf32>
      %61 = arith.maximumf %59, %60 : vector<8x128xf32>
      %62 = arith.truncf %61 : vector<8x128xf32> to vector<8x128xbf16>
      %c0_35 = arith.constant 0 : index
      %c0_36 = arith.constant 0 : index
      %63 = vector.load %arg11[%c0_35, %c0_36] : memref<128x128xbf16, #tpu.memory_space<vmem>>, vector<128x128xbf16>
      %cst_37 = arith.constant dense<0.000000e+00> : vector<8x128xf32>
      %64 = tpu.matmul %62, %63, %cst_37 {dimension_numbers = #tpu.dot_dimension_numbers<[1], [0], [0], [1], [0, 0, 1, 1], [], []>} : vector<8x128xbf16>, vector<128x128xbf16>, vector<8x128xf32> -> vector<8x128xf32>
      %c0_38 = arith.constant 0 : index
      %c0_39 = arith.constant 0 : index
      %65 = vector.load %arg12[%c0_38, %c0_39] : memref<1x128xf32, #tpu.memory_space<vmem>>, vector<1x128xf32>
      %66 = vector.broadcast %65 : vector<1x128xf32> to vector<8x128xf32>
      %67 = arith.addf %64, %66 : vector<8x128xf32>
      %68 = math.tanh %67 : vector<8x128xf32>
      %c0_40 = arith.constant 0 : index
      %c0_41 = arith.constant 0 : index
      %69 = vector.load %arg13[%c0_40, %c0_41] : memref<8x128xf32, #tpu.memory_space<vmem>>, vector<8x128xf32>
      tpu.vector_store %arg13[%c0_40, %c0_41], %68 {strides = array<i32>} : memref<8x128xf32, #tpu.memory_space<vmem>>, vector<8x128xf32>,
    } else {
    }
    return
  }
  func.func @transform_0(%arg0: i32, %arg1: i32) -> (i32, i32) {
    %c0_i32 = arith.constant 0 : i32
    return %arg0, %arg1 : i32, i32
  }
  func.func @transform_1(%arg0: i32, %arg1: i32) -> (i32, i32) {
    %c0_i32 = arith.constant 0 : i32
    %c0_i32_0 = arith.constant 0 : i32
    return %arg1, %c0_i32 : i32, i32
  }
  func.func @transform_2(%arg0: i32, %arg1: i32) -> (i32, i32) {
    %c0_i32 = arith.constant 0 : i32
    %c0_i32_0 = arith.constant 0 : i32
    %c0_i32_1 = arith.constant 0 : i32
    return %c0_i32, %c0_i32_0 : i32, i32
  }
  func.func @transform_3(%arg0: i32, %arg1: i32) -> (i32, i32) {
    %c0_i32 = arith.constant 0 : i32
    %c0_i32_0 = arith.constant 0 : i32
    %c0_i32_1 = arith.constant 0 : i32
    return %c0_i32, %c0_i32_0 : i32, i32
  }
  func.func @transform_4(%arg0: i32, %arg1: i32) -> (i32, i32) {
    %c0_i32 = arith.constant 0 : i32
    %c0_i32_0 = arith.constant 0 : i32
    %c0_i32_1 = arith.constant 0 : i32
    return %c0_i32, %c0_i32_0 : i32, i32
  }
  func.func @transform_5(%arg0: i32, %arg1: i32) -> (i32, i32) {
    %c0_i32 = arith.constant 0 : i32
    %c0_i32_0 = arith.constant 0 : i32
    %c0_i32_1 = arith.constant 0 : i32
    return %c0_i32, %c0_i32_0 : i32, i32
  }
  func.func @transform_6(%arg0: i32, %arg1: i32) -> (i32, i32) {
    %c0_i32 = arith.constant 0 : i32
    %c0_i32_0 = arith.constant 0 : i32
    %c0_i32_1 = arith.constant 0 : i32
    return %c0_i32, %c0_i32_0 : i32, i32
  }
  func.func @transform_7(%arg0: i32, %arg1: i32) -> (i32, i32) {
    %c0_i32 = arith.constant 0 : i32
    %c0_i32_0 = arith.constant 0 : i32
    %c0_i32_1 = arith.constant 0 : i32
    return %c0_i32, %c0_i32_0 : i32, i32
  }
  func.func @transform_8(%arg0: i32, %arg1: i32) -> (i32, i32) {
    %c0_i32 = arith.constant 0 : i32
    %c0_i32_0 = arith.constant 0 : i32
    %c0_i32_1 = arith.constant 0 : i32
    return %c0_i32, %c0_i32_0 : i32, i32
  }
  func.func @transform_9(%arg0: i32, %arg1: i32) -> (i32, i32) {
    %c0_i32 = arith.constant 0 : i32
    %c0_i32_0 = arith.constant 0 : i32
    %c0_i32_1 = arith.constant 0 : i32
    return %c0_i32, %c0_i32_0 : i32, i32
  }
  func.func @transform_10(%arg0: i32, %arg1: i32) -> (i32, i32) {
    %c0_i32 = arith.constant 0 : i32
    %c0_i32_0 = arith.constant 0 : i32
    %c0_i32_1 = arith.constant 0 : i32
    return %c0_i32, %c0_i32_0 : i32, i32
  }
  func.func @transform_11(%arg0: i32, %arg1: i32) -> (i32, i32) {
    %c0_i32 = arith.constant 0 : i32
    %c0_i32_0 = arith.constant 0 : i32
    return %arg0, %c0_i32 : i32, i32
  }
}

module attributes {stable_mosaic.version = 11 : i64} {
  func.func @actor_kernel(%arg0: i32, %arg1: i32, %arg2: memref<8x128xbf16, #tpu.memory_space<vmem>>, %arg3: memref<128x128xbf16, #tpu.memory_space<vmem>>, %arg4: memref<1x128xf32, #tpu.memory_space<vmem>>, %arg5: memref<1x128xf32, #tpu.memory_space<vmem>>, %arg6: memref<1x128xf32, #tpu.memory_space<vmem>>, %arg7: memref<128x128xbf16, #tpu.memory_space<vmem>>, %arg8: memref<1x128xf32, #tpu.memory_space<vmem>>, %arg9: memref<128x128xbf16, #tpu.memory_space<vmem>>, %arg10: memref<1x128xf32, #tpu.memory_space<vmem>>, %arg11: memref<128x128xbf16, #tpu.memory_space<vmem>>, %arg12: memref<1x128xf32, #tpu.memory_space<vmem>>, %arg13: memref<8x128xf32, #tpu.memory_space<vmem>>, %arg14: memref<8x128xf32, #tpu.memory_space<vmem>>) attributes {dimension_semantics = [#tpu.dimension_semantics<parallel>, #tpu.dimension_semantics<arbitrary>], iteration_bounds = array<i64: 1, 1>, scalar_prefetch = 0 : i64, scratch_operands = 1 : i64, tpu.core_type = #tpu.core_type<tc>, window_params = [{transform_indices = @transform_0, window_bounds = array<i64: 8, 128>}, {transform_indices = @transform_1, window_bounds = array<i64: 128, 128>}, {pipeline_mode = #tpu.pipeline_mode<synchronous>, transform_indices = @transform_2, window_bounds = array<i64: 1, 128>}, {pipeline_mode = #tpu.pipeline_mode<synchronous>, transform_indices = @transform_3, window_bounds = array<i64: 1, 128>}, {pipeline_mode = #tpu.pipeline_mode<synchronous>, transform_indices = @transform_4, window_bounds = array<i64: 1, 128>}, {pipeline_mode = #tpu.pipeline_mode<synchronous>, transform_indices = @transform_5, window_bounds = array<i64: 128, 128>}, {pipeline_mode = #tpu.pipeline_mode<synchronous>, transform_indices = @transform_6, window_bounds = array<i64: 1, 128>}, {pipeline_mode = #tpu.pipeline_mode<synchronous>, transform_indices = @transform_7, window_bounds = array<i64: 128, 128>}, {pipeline_mode = #tpu.pipeline_mode<synchronous>, transform_indices = @transform_8, window_bounds = array<i64: 1, 128>}, {pipeline_mode = #tpu.pipeline_mode<synchronous>, transform_indices = @transform_9, window_bounds = array<i64: 128, 128>}, {pipeline_mode = #tpu.pipeline_mode<synchronous>, transform_indices = @transform_10, window_bounds = array<i64: 1, 128>}, {transform_indices = @transform_11, window_bounds = array<i64: 8, 128>}]} {
    %c0_i32 = arith.constant 0 : i32
    %0 = arith.cmpi eq, %arg1, %c0_i32 : i32
    %1 = arith.extui %0 : i1 to i32
    %c0_i32_0 = arith.constant 0 : i32
    %2 = arith.cmpi ne, %1, %c0_i32_0 : i32
    scf.if %2 {
      %cst_10 = arith.constant 0.000000e+00 : f32
      %12 = vector.broadcast %cst_10 : f32 to vector<8x128xf32>
      %c0_11 = arith.constant 0 : index
      %c0_12 = arith.constant 0 : index
      %13 = vector.load %arg14[%c0_11, %c0_12] : memref<8x128xf32, #tpu.memory_space<vmem>>, vector<8x128xf32>
      tpu.vector_store %arg14[%c0_11, %c0_12], %12 {strides = array<i32>} : memref<8x128xf32, #tpu.memory_space<vmem>>, vector<8x128xf32>,
    } else {
    }
    %c0 = arith.constant 0 : index
    %c0_1 = arith.constant 0 : index
    %3 = vector.load %arg14[%c0, %c0_1] : memref<8x128xf32, #tpu.memory_space<vmem>>, vector<8x128xf32>
    %c0_2 = arith.constant 0 : index
    %c0_3 = arith.constant 0 : index
    %4 = vector.load %arg2[%c0_2, %c0_3] : memref<8x128xbf16, #tpu.memory_space<vmem>>, vector<8x128xbf16>
    %c0_4 = arith.constant 0 : index
    %c0_5 = arith.constant 0 : index
    %5 = vector.load %arg3[%c0_4, %c0_5] : memref<128x128xbf16, #tpu.memory_space<vmem>>, vector<128x128xbf16>
    %cst = arith.constant dense<0.000000e+00> : vector<8x128xf32>
    %6 = tpu.matmul %4, %5, %cst {dimension_numbers = #tpu.dot_dimension_numbers<[1], [0], [0], [1], [0, 0, 1, 1], [], []>} : vector<8x128xbf16>, vector<128x128xbf16>, vector<8x128xf32> -> vector<8x128xf32>
    %7 = arith.addf %3, %6 : vector<8x128xf32>
    %c0_6 = arith.constant 0 : index
    %c0_7 = arith.constant 0 : index
    %8 = vector.load %arg14[%c0_6, %c0_7] : memref<8x128xf32, #tpu.memory_space<vmem>>, vector<8x128xf32>
    tpu.vector_store %arg14[%c0_6, %c0_7], %7 {strides = array<i32>} : memref<8x128xf32, #tpu.memory_space<vmem>>, vector<8x128xf32>,
    %c0_i32_8 = arith.constant 0 : i32
    %9 = arith.cmpi eq, %arg1, %c0_i32_8 : i32
    %10 = arith.extui %9 : i1 to i32
    %c0_i32_9 = arith.constant 0 : i32
    %11 = arith.cmpi ne, %10, %c0_i32_9 : i32
    scf.if %11 {
      %c0_10 = arith.constant 0 : index
      %c0_11 = arith.constant 0 : index
      %12 = vector.load %arg14[%c0_10, %c0_11] : memref<8x128xf32, #tpu.memory_space<vmem>>, vector<8x128xf32>
      %c0_12 = arith.constant 0 : index
      %c0_13 = arith.constant 0 : index
      %13 = vector.load %arg4[%c0_12, %c0_13] : memref<1x128xf32, #tpu.memory_space<vmem>>, vector<1x128xf32>
      %14 = vector.broadcast %13 : vector<1x128xf32> to vector<8x128xf32>
      %15 = arith.addf %12, %14 : vector<8x128xf32>
      %16 = tpu.iota {dimensions = array<i32: 1>} : vector<1x128xi32>
      %c32_i32 = arith.constant 32 : i32
      %17 = vector.broadcast %c32_i32 : i32 to vector<1x128xi32>
      %18 = arith.cmpi slt, %16, %17 : vector<1x128xi32>
      %19 = arith.extui %18 : vector<1x128xi1> to vector<1x128xi32>
      %20 = arith.sitofp %19 : vector<1x128xi32> to vector<1x128xf32>
      %cst_14 = arith.constant dense<0.000000e+00> : vector<8xf32>
      %21 = vector.multi_reduction <add>, %15, %cst_14 [1] : vector<8x128xf32> to vector<8xf32>
      %22 = vector.shape_cast %21 : vector<8xf32> to vector<8x1xf32>
      %cst_15 = arith.constant 3.125000e-02 : f32
      %23 = vector.broadcast %cst_15 : f32 to vector<8x1xf32>
      %24 = arith.mulf %22, %23 : vector<8x1xf32>
      %25 = vector.broadcast %24 : vector<8x1xf32> to vector<8x128xf32>
      %26 = arith.subf %15, %25 : vector<8x128xf32>
      %27 = vector.broadcast %20 : vector<1x128xf32> to vector<8x128xf32>
      %28 = arith.mulf %26, %27 : vector<8x128xf32>
      %29 = arith.mulf %28, %28 : vector<8x128xf32>
      %cst_16 = arith.constant dense<0.000000e+00> : vector<8xf32>
      %30 = vector.multi_reduction <add>, %29, %cst_16 [1] : vector<8x128xf32> to vector<8xf32>
      %31 = vector.shape_cast %30 : vector<8xf32> to vector<8x1xf32>
      %cst_17 = arith.constant 3.125000e-02 : f32
      %32 = vector.broadcast %cst_17 : f32 to vector<8x1xf32>
      %33 = arith.mulf %31, %32 : vector<8x1xf32>
      %cst_18 = arith.constant 9.99999974E-6 : f32
      %34 = vector.broadcast %cst_18 : f32 to vector<8x1xf32>
      %35 = arith.addf %33, %34 : vector<8x1xf32>
      %36 = math.rsqrt %35 : vector<8x1xf32>
      %37 = vector.broadcast %36 : vector<8x1xf32> to vector<8x128xf32>
      %38 = arith.mulf %28, %37 : vector<8x128xf32>
      %c0_19 = arith.constant 0 : index
      %c0_20 = arith.constant 0 : index
      %39 = vector.load %arg5[%c0_19, %c0_20] : memref<1x128xf32, #tpu.memory_space<vmem>>, vector<1x128xf32>
      %40 = vector.broadcast %39 : vector<1x128xf32> to vector<8x128xf32>
      %41 = arith.mulf %38, %40 : vector<8x128xf32>
      %c0_21 = arith.constant 0 : index
      %c0_22 = arith.constant 0 : index
      %42 = vector.load %arg6[%c0_21, %c0_22] : memref<1x128xf32, #tpu.memory_space<vmem>>, vector<1x128xf32>
      %43 = vector.broadcast %42 : vector<1x128xf32> to vector<8x128xf32>
      %44 = arith.addf %41, %43 : vector<8x128xf32>
      %45 = math.tanh %44 : vector<8x128xf32>
      %46 = arith.truncf %45 : vector<8x128xf32> to vector<8x128xbf16>
      %c0_23 = arith.constant 0 : index
      %c0_24 = arith.constant 0 : index
      %47 = vector.load %arg7[%c0_23, %c0_24] : memref<128x128xbf16, #tpu.memory_space<vmem>>, vector<128x128xbf16>
      %cst_25 = arith.constant dense<0.000000e+00> : vector<8x128xf32>
      %48 = tpu.matmul %46, %47, %cst_25 {dimension_numbers = #tpu.dot_dimension_numbers<[1], [0], [0], [1], [0, 0, 1, 1], [], []>} : vector<8x128xbf16>, vector<128x128xbf16>, vector<8x128xf32> -> vector<8x128xf32>
      %c0_26 = arith.constant 0 : index
      %c0_27 = arith.constant 0 : index
      %49 = vector.load %arg8[%c0_26, %c0_27] : memref<1x128xf32, #tpu.memory_space<vmem>>, vector<1x128xf32>
      %50 = vector.broadcast %49 : vector<1x128xf32> to vector<8x128xf32>
      %51 = arith.addf %48, %50 : vector<8x128xf32>
      %cst_28 = arith.constant 0.000000e+00 : f32
      %52 = vector.broadcast %cst_28 : f32 to vector<8x128xf32>
      %53 = arith.maximumf %51, %52 : vector<8x128xf32>
      %54 = arith.truncf %53 : vector<8x128xf32> to vector<8x128xbf16>
      %c0_29 = arith.constant 0 : index
      %c0_30 = arith.constant 0 : index
      %55 = vector.load %arg9[%c0_29, %c0_30] : memref<128x128xbf16, #tpu.memory_space<vmem>>, vector<128x128xbf16>
      %cst_31 = arith.constant dense<0.000000e+00> : vector<8x128xf32>
      %56 = tpu.matmul %54, %55, %cst_31 {dimension_numbers = #tpu.dot_dimension_numbers<[1], [0], [0], [1], [0, 0, 1, 1], [], []>} : vector<8x128xbf16>, vector<128x128xbf16>, vector<8x128xf32> -> vector<8x128xf32>
      %c0_32 = arith.constant 0 : index
      %c0_33 = arith.constant 0 : index
      %57 = vector.load %arg10[%c0_32, %c0_33] : memref<1x128xf32, #tpu.memory_space<vmem>>, vector<1x128xf32>
      %58 = vector.broadcast %57 : vector<1x128xf32> to vector<8x128xf32>
      %59 = arith.addf %56, %58 : vector<8x128xf32>
      %cst_34 = arith.constant 0.000000e+00 : f32
      %60 = vector.broadcast %cst_34 : f32 to vector<8x128xf32>
      %61 = arith.maximumf %59, %60 : vector<8x128xf32>
      %62 = arith.truncf %61 : vector<8x128xf32> to vector<8x128xbf16>
      %c0_35 = arith.constant 0 : index
      %c0_36 = arith.constant 0 : index
      %63 = vector.load %arg11[%c0_35, %c0_36] : memref<128x128xbf16, #tpu.memory_space<vmem>>, vector<128x128xbf16>
      %cst_37 = arith.constant dense<0.000000e+00> : vector<8x128xf32>
      %64 = tpu.matmul %62, %63, %cst_37 {dimension_numbers = #tpu.dot_dimension_numbers<[1], [0], [0], [1], [0, 0, 1, 1], [], []>} : vector<8x128xbf16>, vector<128x128xbf16>, vector<8x128xf32> -> vector<8x128xf32>
      %c0_38 = arith.constant 0 : index
      %c0_39 = arith.constant 0 : index
      %65 = vector.load %arg12[%c0_38, %c0_39] : memref<1x128xf32, #tpu.memory_space<vmem>>, vector<1x128xf32>
      %66 = vector.broadcast %65 : vector<1x128xf32> to vector<8x128xf32>
      %67 = arith.addf %64, %66 : vector<8x128xf32>
      %68 = math.tanh %67 : vector<8x128xf32>
      %c0_40 = arith.constant 0 : index
      %c0_41 = arith.constant 0 : index
      %69 = vector.load %arg13[%c0_40, %c0_41] : memref<8x128xf32, #tpu.memory_space<vmem>>, vector<8x128xf32>
      tpu.vector_store %arg13[%c0_40, %c0_41], %68 {strides = array<i32>} : memref<8x128xf32, #tpu.memory_space<vmem>>, vector<8x128xf32>,
    } else {
    }
    return
  }
  func.func @transform_0(%arg0: i32, %arg1: i32) -> (i32, i32) {
    %c0_i32 = arith.constant 0 : i32
    return %arg0, %arg1 : i32, i32
  }
  func.func @transform_1(%arg0: i32, %arg1: i32) -> (i32, i32) {
    %c0_i32 = arith.constant 0 : i32
    %c0_i32_0 = arith.constant 0 : i32
    return %arg1, %c0_i32 : i32, i32
  }
  func.func @transform_2(%arg0: i32, %arg1: i32) -> (i32, i32) {
    %c0_i32 = arith.constant 0 : i32
    %c0_i32_0 = arith.constant 0 : i32
    %c0_i32_1 = arith.constant 0 : i32
    return %c0_i32, %c0_i32_0 : i32, i32
  }
  func.func @transform_3(%arg0: i32, %arg1: i32) -> (i32, i32) {
    %c0_i32 = arith.constant 0 : i32
    %c0_i32_0 = arith.constant 0 : i32
    %c0_i32_1 = arith.constant 0 : i32
    return %c0_i32, %c0_i32_0 : i32, i32
  }
  func.func @transform_4(%arg0: i32, %arg1: i32) -> (i32, i32) {
    %c0_i32 = arith.constant 0 : i32
    %c0_i32_0 = arith.constant 0 : i32
    %c0_i32_1 = arith.constant 0 : i32
    return %c0_i32, %c0_i32_0 : i32, i32
  }
  func.func @transform_5(%arg0: i32, %arg1: i32) -> (i32, i32) {
    %c0_i32 = arith.constant 0 : i32
    %c0_i32_0 = arith.constant 0 : i32
    %c0_i32_1 = arith.constant 0 : i32
    return %c0_i32, %c0_i32_0 : i32, i32
  }
  func.func @transform_6(%arg0: i32, %arg1: i32) -> (i32, i32) {
    %c0_i32 = arith.constant 0 : i32
    %c0_i32_0 = arith.constant 0 : i32
    %c0_i32_1 = arith.constant 0 : i32
    return %c0_i32, %c0_i32_0 : i32, i32
  }
  func.func @transform_7(%arg0: i32, %arg1: i32) -> (i32, i32) {
    %c0_i32 = arith.constant 0 : i32
    %c0_i32_0 = arith.constant 0 : i32
    %c0_i32_1 = arith.constant 0 : i32
    return %c0_i32, %c0_i32_0 : i32, i32
  }
  func.func @transform_8(%arg0: i32, %arg1: i32) -> (i32, i32) {
    %c0_i32 = arith.constant 0 : i32
    %c0_i32_0 = arith.constant 0 : i32
    %c0_i32_1 = arith.constant 0 : i32
    return %c0_i32, %c0_i32_0 : i32, i32
  }
  func.func @transform_9(%arg0: i32, %arg1: i32) -> (i32, i32) {
    %c0_i32 = arith.constant 0 : i32
    %c0_i32_0 = arith.constant 0 : i32
    %c0_i32_1 = arith.constant 0 : i32
    return %c0_i32, %c0_i32_0 : i32, i32
  }
  func.func @transform_10(%arg0: i32, %arg1: i32) -> (i32, i32) {
    %c0_i32 = arith.constant 0 : i32
    %c0_i32_0 = arith.constant 0 : i32
    %c0_i32_1 = arith.constant 0 : i32
    return %c0_i32, %c0_i32_0 : i32, i32
  }
  func.func @transform_11(%arg0: i32, %arg1: i32) -> (i32, i32) {
    %c0_i32 = arith.constant 0 : i32
    %c0_i32_0 = arith.constant 0 : i32
    return %arg0, %c0_i32 : i32, i32
  }
}

</mosaic_0001>

<llo_original>
// kernel: tpu_custom_call.1
$region0: #{tpu_custom_call.1}
  #allocation0 [shape = 'u32[]', space=smem, size = 0x4, offset = 0x4, fixed_abs, tag = 'smem constant byte address 0x4 - core index']
  #allocation1 [shape = 'u32[144,128]{1,0:T(1,128)}', space=vmem, size = 0x12000, scoped, tag = 'internal scratch']
  #allocation2 [shape = 'f32[8,128]{1,0:T(8,128)}', space=vmem, size = 0x1000, scoped, tag = 'scratch operand']
  %s0 = inlined_call_operand.hbm [shape: bf16[8,128], index: 0, kind: input, shape index: {}]
  %s1 = inlined_call_operand.hbm [shape: bf16[128,128], index: 1, kind: input, shape index: {}]
  %s2 = inlined_call_operand.vmem [shape: f32[1,128], index: 2, kind: input, shape index: {}]
  %s3 = inlined_call_operand.vmem [shape: f32[1,128], index: 3, kind: input, shape index: {}]
  %s4 = inlined_call_operand.vmem [shape: f32[1,128], index: 4, kind: input, shape index: {}]
  %s5 = inlined_call_operand.hbm [shape: bf16[128,128], index: 5, kind: input, shape index: {}]
  %s6 = inlined_call_operand.vmem [shape: f32[1,128], index: 6, kind: input, shape index: {}]
  %s7 = inlined_call_operand.hbm [shape: bf16[128,128], index: 7, kind: input, shape index: {}]
  %s8 = inlined_call_operand.vmem [shape: f32[1,128], index: 8, kind: input, shape index: {}]
  %s9 = inlined_call_operand.hbm [shape: bf16[128,128], index: 9, kind: input, shape index: {}]
  %s10 = inlined_call_operand.vmem [shape: f32[1,128], index: 10, kind: input, shape index: {}]
  %s11 = inlined_call_operand.hbm [shape: f32[8,128], index: 11, kind: output, shape index: {}]
  %s12 = sld [smem:[#allocation0]]
  $region82: #{tpu_custom_call.1} parent=0
    _
  %s14 = ssub.s32 1, %s12
  %s15 = scalar_select 0, %s14, %s12
  $region1: #{tpu_custom_call.1} parent=0
    #allocation3 [shape = 'u8[2048]{0}', space=vmem, size = 0x800, scoped, tag = 'input window, operand 0, single buffered']
    #allocation4 [shape = 's32[1]{0}', space=sflag, size = 0x4, scoped, tag = 'scoped memory for tpu_custom_call.1']
    #allocation5 [shape = 's32[1]{0}', space=sflag, size = 0x4, scoped, tag = 'scoped memory for tpu_custom_call.1']
    #allocation6 [shape = 'u8[32768]{0}', space=vmem, size = 0x8000, scoped, tag = 'input window, operand 1, single buffered']
    #allocation7 [shape = 's32[1]{0}', space=sflag, size = 0x4, scoped, tag = 'scoped memory for tpu_custom_call.1']
    #allocation8 [shape = 'u8[32768]{0}', space=vmem, size = 0x8000, scoped, tag = 'input window, operand 5, single buffered']
    #allocation9 [shape = 'u8[32768]{0}', space=vmem, size = 0x8000, scoped, tag = 'input window, operand 7, single buffered']
    #allocation10 [shape = 's32[1]{0}', space=sflag, size = 0x4, scoped, tag = 'scoped memory for tpu_custom_call.1']
    #allocation11 [shape = 'u8[32768]{0}', space=vmem, size = 0x8000, scoped, tag = 'input window, operand 9, single buffered']
    #allocation12 [shape = 'u8[4096]{0}', space=vmem, size = 0x1000, scoped, tag = 'output window, operand 0, single buffered']
    %16 = vsyncpa [#allocation4], 0
    %17 = vsyncpa [#allocation7], 0
    %18 = vsyncpa [#allocation10], 0
    %19 = vsyncpa [#allocation5], 0
    // Predicated region
    $region2: #{tpu_custom_call.1} parent=1 // pred_check
      _
    $region3: #{tpu_custom_call.1} parent=1 // pred_check_branch
      %21 = sbr.rel (0) target = $region5
    $region4: #{tpu_custom_call.1} parent=1 // pred_region
      %s23 = ssub.s32 64, 64
      %24 = vsyncadd [#allocation4], %s23
      %s26 = sshll.u32 [#allocation3], 4
      %s27 = int_to_ptr.vmem [resolvable:$true] %s26
      %29 = dma.hbm_to_vmem [thread:$0]  %s0, 64, %s27, [#allocation4]
    $region5: #{tpu_custom_call.1} parent=1 // pred_fallthru
      _
    // Predicated region
    $region6: #{tpu_custom_call.1} parent=1 // pred_check
      _
    $region7: #{tpu_custom_call.1} parent=1 // pred_check_branch
      %31 = sbr.rel (0) target = $region9
    $region8: #{tpu_custom_call.1} parent=1 // pred_region
      %s33 = ssub.s32 1024, 1024
      %34 = vsyncadd [#allocation7], %s33
      %s35 = sshll.u32 [#allocation6], 4
      %s36 = int_to_ptr.vmem [resolvable:$true] %s35
      %41 = dma.hbm_to_vmem [thread:$0]  %s1, 1024, %s36, [#allocation7], 64, 64, 4
    $region9: #{tpu_custom_call.1} parent=1 // pred_fallthru
      _
    // Predicated region
    $region10: #{tpu_custom_call.1} parent=1 // pred_check
      _
    $region11: #{tpu_custom_call.1} parent=1 // pred_check_branch
      %43 = sbr.rel (0) target = $region13
    $region12: #{tpu_custom_call.1} parent=1 // pred_region
      _
    $region13: #{tpu_custom_call.1} parent=1 // pred_fallthru
      _
    // Predicated region
    $region14: #{tpu_custom_call.1} parent=1 // pred_check
      _
    $region15: #{tpu_custom_call.1} parent=1 // pred_check_branch
      %45 = sbr.rel (0) target = $region17
    $region16: #{tpu_custom_call.1} parent=1 // pred_region
      _
    $region17: #{tpu_custom_call.1} parent=1 // pred_fallthru
      _
    // Predicated region
    $region18: #{tpu_custom_call.1} parent=1 // pred_check
      _
    $region19: #{tpu_custom_call.1} parent=1 // pred_check_branch
      %47 = sbr.rel (0) target = $region21
    $region20: #{tpu_custom_call.1} parent=1 // pred_region
      _
    $region21: #{tpu_custom_call.1} parent=1 // pred_fallthru
      _
    // Predicated region
    $region22: #{tpu_custom_call.1} parent=1 // pred_check
      _
    $region23: #{tpu_custom_call.1} parent=1 // pred_check_branch
      %49 = sbr.rel (0) target = $region25
    $region24: #{tpu_custom_call.1} parent=1 // pred_region
      %s51 = ssub.s32 1024, 1024
      %52 = vsyncadd [#allocation7], %s51
      %s53 = sshll.u32 [#allocation8], 4
      %s54 = int_to_ptr.vmem [resolvable:$true] %s53
      %59 = dma.hbm_to_vmem [thread:$0]  %s5, 1024, %s54, [#allocation7], 64, 64, 4
    $region25: #{tpu_custom_call.1} parent=1 // pred_fallthru
      _
    // Predicated region
    $region26: #{tpu_custom_call.1} parent=1 // pred_check
      _
    $region27: #{tpu_custom_call.1} parent=1 // pred_check_branch
      %61 = sbr.rel (0) target = $region29
    $region28: #{tpu_custom_call.1} parent=1 // pred_region
      _
    $region29: #{tpu_custom_call.1} parent=1 // pred_fallthru
      _
    // Predicated region
    $region30: #{tpu_custom_call.1} parent=1 // pred_check
      _
    $region31: #{tpu_custom_call.1} parent=1 // pred_check_branch
      %63 = sbr.rel (0) target = $region33
    $region32: #{tpu_custom_call.1} parent=1 // pred_region
      %s65 = ssub.s32 1024, 1024
      %66 = vsyncadd [#allocation10], %s65
      %s67 = sshll.u32 [#allocation9], 4
      %s68 = int_to_ptr.vmem [resolvable:$true] %s67
      %73 = dma.hbm_to_vmem [thread:$0]  %s7, 1024, %s68, [#allocation10], 64, 64, 4
    $region33: #{tpu_custom_call.1} parent=1 // pred_fallthru
      _
    // Predicated region
    $region34: #{tpu_custom_call.1} parent=1 // pred_check
      _
    $region35: #{tpu_custom_call.1} parent=1 // pred_check_branch
      %75 = sbr.rel (0) target = $region37
    $region36: #{tpu_custom_call.1} parent=1 // pred_region
      _
    $region37: #{tpu_custom_call.1} parent=1 // pred_fallthru
      _
    // Predicated region
    $region38: #{tpu_custom_call.1} parent=1 // pred_check
      _
    $region39: #{tpu_custom_call.1} parent=1 // pred_check_branch
      %77 = sbr.rel (0) target = $region41
    $region40: #{tpu_custom_call.1} parent=1 // pred_region
      %s79 = ssub.s32 1024, 1024
      %80 = vsyncadd [#allocation10], %s79
      %s81 = sshll.u32 [#allocation11], 4
      %s82 = int_to_ptr.vmem [resolvable:$true] %s81
      %87 = dma.hbm_to_vmem [thread:$0]  %s9, 1024, %s82, [#allocation10], 64, 64, 4
    $region41: #{tpu_custom_call.1} parent=1 // pred_fallthru
      _
    // Predicated region
    $region42: #{tpu_custom_call.1} parent=1 // pred_check
      _
    $region43: #{tpu_custom_call.1} parent=1 // pred_check_branch
      %89 = sbr.rel (0) target = $region45
    $region44: #{tpu_custom_call.1} parent=1 // pred_region
      _
    $region45: #{tpu_custom_call.1} parent=1 // pred_fallthru
      _
    // Predicated region
    $region46: #{tpu_custom_call.1} parent=1 // pred_check
      _
    $region47: #{tpu_custom_call.1} parent=1 // pred_check_branch
      %91 = sbr.rel (0) target = $region49
    $region48: #{tpu_custom_call.1} parent=1 // pred_region
      %92 = dma.done [#allocation4], 64
    $region49: #{tpu_custom_call.1} parent=1 // pred_fallthru
      _
    // Predicated region
    $region50: #{tpu_custom_call.1} parent=1 // pred_check
      _
    $region51: #{tpu_custom_call.1} parent=1 // pred_check_branch
      %94 = sbr.rel (0) target = $region53
    $region52: #{tpu_custom_call.1} parent=1 // pred_region
      %95 = dma.done [#allocation7], 1024
    $region53: #{tpu_custom_call.1} parent=1 // pred_fallthru
      _
    // Predicated region
    $region54: #{tpu_custom_call.1} parent=1 // pred_check
      _
    $region55: #{tpu_custom_call.1} parent=1 // pred_check_branch
      %97 = sbr.rel (0) target = $region57
    $region56: #{tpu_custom_call.1} parent=1 // pred_region
      %98 = dma.done [#allocation7], 1024
    $region57: #{tpu_custom_call.1} parent=1 // pred_fallthru
      _
    // Predicated region
    $region58: #{tpu_custom_call.1} parent=1 // pred_check
      _
    $region59: #{tpu_custom_call.1} parent=1 // pred_check_branch
      %100 = sbr.rel (0) target = $region61
    $region60: #{tpu_custom_call.1} parent=1 // pred_region
      %101 = dma.done [#allocation10], 1024
    $region61: #{tpu_custom_call.1} parent=1 // pred_fallthru
      _
    // Predicated region
    $region62: #{tpu_custom_call.1} parent=1 // pred_check
      _
    $region63: #{tpu_custom_call.1} parent=1 // pred_check_branch
      %103 = sbr.rel (0) target = $region65
    $region64: #{tpu_custom_call.1} parent=1 // pred_region
      %104 = dma.done [#allocation10], 1024
    $region65: #{tpu_custom_call.1} parent=1 // pred_fallthru
      _
    %p106 = scmp.eq.s32.totalorder 0, 0
    // Predicated region
    $region66: #{tpu_custom_call.1} parent=1 // pred_check
      %p107 = pneg %p106
    $region67: #{tpu_custom_call.1} parent=1 // pred_check_branch
      %109 = sbr.rel (%p107) target = $region69
    $region68: #{tpu_custom_call.1} parent=1 // pred_region
      %110 = vst [vmem:[#allocation2] sm:$0xff] 0.0
    $region69: #{tpu_custom_call.1} parent=1 // pred_fallthru
      _
    %v111 = vld [vmem:[#allocation2] sm:$0xff]
    %v112 = vld [vmem:[#allocation3] sm:$0xf]
    %v113 = vld [vmem:[#allocation6] sm:$0xf]
    %v114 = vld [vmem:[#allocation6 + $0x4] sm:$0xf]
    %v115 = vld [vmem:[#allocation6 + $0x8] sm:$0xf]
    %v116 = vld [vmem:[#allocation6 + $0xc] sm:$0xf]
    %v117 = vld [vmem:[#allocation6 + $0x10] sm:$0xf]
    %v118 = vld [vmem:[#allocation6 + $0x14] sm:$0xf]
    %v119 = vld [vmem:[#allocation6 + $0x18] sm:$0xf]
    %v120 = vld [vmem:[#allocation6 + $0x1c] sm:$0xf]
    %v121 = vld [vmem:[#allocation6 + $0x20] sm:$0xf]
    %v122 = vld [vmem:[#allocation6 + $0x24] sm:$0xf]
    %v123 = vld [vmem:[#allocation6 + $0x28] sm:$0xf]
    %v124 = vld [vmem:[#allocation6 + $0x2c] sm:$0xf]
    %v125 = vld [vmem:[#allocation6 + $0x30] sm:$0xf]
    %v126 = vld [vmem:[#allocation6 + $0x34] sm:$0xf]
    %v127 = vld [vmem:[#allocation6 + $0x38] sm:$0xf]
    %v128 = vld [vmem:[#allocation6 + $0x3c] sm:$0xf]
    %v145 = vunpack.c.l.b16 %v113
    %v146 = vunpack.c.l.b16 %v114
    %v147 = vunpack.c.l.b16 %v115
    %v148 = vunpack.c.l.b16 %v116
    %v149 = vunpack.c.l.b16 %v117
    %v150 = vunpack.c.l.b16 %v118
    %v151 = vunpack.c.l.b16 %v119
    %v152 = vunpack.c.l.b16 %v120
    %v153 = vunpack.c.l.b16 %v121
    %v154 = vunpack.c.l.b16 %v122
    %v155 = vunpack.c.l.b16 %v123
    %v156 = vunpack.c.l.b16 %v124
    %v157 = vunpack.c.l.b16 %v125
    %v158 = vunpack.c.l.b16 %v126
    %v159 = vunpack.c.l.b16 %v127
    %v160 = vunpack.c.l.b16 %v128
    %v161 = vpack.c.b16 %v146, %v145
    %v162 = vpack.c.b16 %v148, %v147
    %v163 = vpack.c.b16 %v150, %v149
    %v164 = vpack.c.b16 %v152, %v151
    %v165 = vpack.c.b16 %v154, %v153
    %v166 = vpack.c.b16 %v156, %v155
    %v167 = vpack.c.b16 %v158, %v157
    %v168 = vpack.c.b16 %v160, %v159
    %177 = vmatprep.subr.bf16.mxu0 0
    %178 = vmatpush1.bf16.msra.mxu0 %v161
    %179 = vmatprep.subr.bf16.mxu0 0
    %180 = vmatpush1.bf16.msra.mxu0 %v162
    %181 = vmatprep.subr.bf16.mxu0 0
    %182 = vmatpush1.bf16.msra.mxu0 %v163
    %183 = vmatprep.subr.bf16.mxu0 0
    %184 = vmatpush1.bf16.msra.mxu0 %v164
    %185 = vmatprep.subr.bf16.mxu0 0
    %186 = vmatpush1.bf16.msra.mxu0 %v165
    %187 = vmatprep.subr.bf16.mxu0 0
    %188 = vmatpush1.bf16.msra.mxu0 %v166
    %189 = vmatprep.subr.bf16.mxu0 0
    %190 = vmatpush1.bf16.msra.mxu0 %v167
    %191 = vmatprep.subr.bf16.mxu0 0
    %192 = vmatpush1.bf16.msra.mxu0 %v168
    %193 = vmatprep.subr.bf16.mxu0 0
    %194 = vmatpush1.bf16.msra.mxu0 0
    %195 = vmatprep.subr.bf16.mxu0 0
    %196 = vmatpush1.bf16.msra.mxu0 0
    %197 = vmatprep.subr.bf16.mxu0 0
    %198 = vmatpush1.bf16.msra.mxu0 0
    %199 = vmatprep.subr.bf16.mxu0 0
    %200 = vmatpush1.bf16.msra.mxu0 0
    %201 = vmatprep.subr.bf16.mxu0 0
    %202 = vmatpush1.bf16.msra.mxu0 0
    %203 = vmatprep.subr.bf16.mxu0 0
    %204 = vmatpush1.bf16.msra.mxu0 0
    %205 = vmatprep.subr.bf16.mxu0 0
    %206 = vmatpush1.bf16.msra.mxu0 0
    %207 = vmatprep.subr.bf16.mxu0 0
    %208 = vmatpush1.bf16.msra.mxu0 0
    %209 = vmatprep.mubr.bf16.mxu0 0
    %210 = vmatmul.mubr.bf16.gmra.mrb[0].mxu0 %v112
    %v211 = vpop.f32.mrb[0].mxu0
    %v212 = vadd.f32 0.0, %v211
    %v213 = vpop.f32.mrb[0].mxu0
    %v214 = vpop.f32.mrb[0].mxu0
    %v215 = vpop.f32.mrb[0].mxu0
    %216 = vdwg.mxu0
    %v217 = vadd.f32 %v111, %v212
    %218 = vst [vmem:[#allocation2] sm:$0xff] %v217
    // Predicated region
    $region70: #{tpu_custom_call.1} parent=1 // pred_check
      %p219 = pneg %p106
    $region71: #{tpu_custom_call.1} parent=1 // pred_check_branch
      %221 = sbr.rel (%p219) target = $region73
    $region72: #{tpu_custom_call.1} parent=1 // pred_region
      %v222 = vld [vmem:[#allocation2] sm:$0xff]
      %v223 = vld [vmem:[%s2] sm:$0x1]
      %v225 = vlaneseq
      %v226 = vshrl.u32 %v225, 7
      %v227 = vsub.s32 0, %v226
      %v228 = vrot.slane %v223, %v227
      %v230 = vadd.f32 %v222, %v228
      %v231 = vlaneseq
      %v232 = vand.u32 %v231, 127
      %vm233 = vcmp.lt.s32.totalorder %v232, 32
      %v234 = vsel %vm233, 1, 0
      %v235 = vcvt.s32.f32 %v234
      %236 = vadd.xlane.f32.xlu0 %v230
      %v237 = vpop.xlane.xlu0 %236
      %v238 = vmul.f32 %v237, 0.03125
      %v239 = vsub.f32 %v230, %v238
      %v240 = vmul.f32 %v239, %v235
      %v241 = vmul.f32 %v240, %v240
      %242 = vadd.xlane.f32.xlu0 %v241
      %v243 = vpop.xlane.xlu0 %242
      %v244 = vmul.f32 %v243, 0.03125
      %v245 = vadd.f32 %v244, 1e-05
      %v246 = vrsqrt.pop %v245
      %v247 = vmul.f32 %v240, %v246
      %v248 = vld [vmem:[%s3] sm:$0x1]
      %v250 = vlaneseq
      %v251 = vshrl.u32 %v250, 7
      %v252 = vsub.s32 0, %v251
      %v253 = vrot.slane %v248, %v252
      %v255 = vmul.f32 %v247, %v253
      %v256 = vld [vmem:[%s4] sm:$0x1]
      %v258 = vlaneseq
      %v259 = vshrl.u32 %v258, 7
      %v260 = vsub.s32 0, %v259
      %v261 = vrot.slane %v256, %v260
      %v263 = vadd.f32 %v255, %v261
      %v264 = vtanh.pop %v263
      %v265 = vpack.c.bf16 %v264, %v264
      %v266 = vld [vmem:[#allocation8] sm:$0xf]
      %v267 = vld [vmem:[#allocation8 + $0x4] sm:$0xf]
      %v268 = vld [vmem:[#allocation8 + $0x8] sm:$0xf]
      %v269 = vld [vmem:[#allocation8 + $0xc] sm:$0xf]
      %v270 = vld [vmem:[#allocation8 + $0x10] sm:$0xf]
      %v271 = vld [vmem:[#allocation8 + $0x14] sm:$0xf]
      %v272 = vld [vmem:[#allocation8 + $0x18] sm:$0xf]
      %v273 = vld [vmem:[#allocation8 + $0x1c] sm:$0xf]
      %v274 = vld [vmem:[#allocation8 + $0x20] sm:$0xf]
      %v275 = vld [vmem:[#allocation8 + $0x24] sm:$0xf]
      %v276 = vld [vmem:[#allocation8 + $0x28] sm:$0xf]
      %v277 = vld [vmem:[#allocation8 + $0x2c] sm:$0xf]
      %v278 = vld [vmem:[#allocation8 + $0x30] sm:$0xf]
      %v279 = vld [vmem:[#allocation8 + $0x34] sm:$0xf]
      %v280 = vld [vmem:[#allocation8 + $0x38] sm:$0xf]
      %v281 = vld [vmem:[#allocation8 + $0x3c] sm:$0xf]
      %v282 = vld [vmem:[%s6] sm:$0x1]
      %v284 = vlaneseq
      %v285 = vshrl.u32 %v284, 7
      %v286 = vsub.s32 0, %v285
      %v287 = vrot.slane %v282, %v286
      %v305 = vunpack.c.l.b16 %v266
      %v306 = vunpack.c.l.b16 %v267
      %v307 = vunpack.c.l.b16 %v268
      %v308 = vunpack.c.l.b16 %v269
      %v309 = vunpack.c.l.b16 %v270
      %v310 = vunpack.c.l.b16 %v271
      %v311 = vunpack.c.l.b16 %v272
      %v312 = vunpack.c.l.b16 %v273
      %v313 = vunpack.c.l.b16 %v274
      %v314 = vunpack.c.l.b16 %v275
      %v315 = vunpack.c.l.b16 %v276
      %v316 = vunpack.c.l.b16 %v277
      %v317 = vunpack.c.l.b16 %v278
      %v318 = vunpack.c.l.b16 %v279
      %v319 = vunpack.c.l.b16 %v280
      %v320 = vunpack.c.l.b16 %v281
      %v321 = vpack.c.b16 %v306, %v305
      %v322 = vpack.c.b16 %v308, %v307
      %v323 = vpack.c.b16 %v310, %v309
      %v324 = vpack.c.b16 %v312, %v311
      %v325 = vpack.c.b16 %v314, %v313
      %v326 = vpack.c.b16 %v316, %v315
      %v327 = vpack.c.b16 %v318, %v317
      %v328 = vpack.c.b16 %v320, %v319
      %337 = vmatprep.subr.bf16.mxu0 0
      %338 = vmatpush1.bf16.msra.mxu0 %v321
      %339 = vmatprep.subr.bf16.mxu0 0
      %340 = vmatpush1.bf16.msra.mxu0 %v322
      %341 = vmatprep.subr.bf16.mxu0 0
      %342 = vmatpush1.bf16.msra.mxu0 %v323
      %343 = vmatprep.subr.bf16.mxu0 0
      %344 = vmatpush1.bf16.msra.mxu0 %v324
      %345 = vmatprep.subr.bf16.mxu0 0
      %346 = vmatpush1.bf16.msra.mxu0 %v325
      %347 = vmatprep.subr.bf16.mxu0 0
      %348 = vmatpush1.bf16.msra.mxu0 %v326
      %349 = vmatprep.subr.bf16.mxu0 0
      %350 = vmatpush1.bf16.msra.mxu0 %v327
      %351 = vmatprep.subr.bf16.mxu0 0
      %352 = vmatpush1.bf16.msra.mxu0 %v328
      %353 = vmatprep.subr.bf16.mxu0 0
      %354 = vmatpush1.bf16.msra.mxu0 0
      %355 = vmatprep.subr.bf16.mxu0 0
      %356 = vmatpush1.bf16.msra.mxu0 0
      %357 = vmatprep.subr.bf16.mxu0 0
      %358 = vmatpush1.bf16.msra.mxu0 0
      %359 = vmatprep.subr.bf16.mxu0 0
      %360 = vmatpush1.bf16.msra.mxu0 0
      %361 = vmatprep.subr.bf16.mxu0 0
      %362 = vmatpush1.bf16.msra.mxu0 0
      %363 = vmatprep.subr.bf16.mxu0 0
      %364 = vmatpush1.bf16.msra.mxu0 0
      %365 = vmatprep.subr.bf16.mxu0 0
      %366 = vmatpush1.bf16.msra.mxu0 0
      %367 = vmatprep.subr.bf16.mxu0 0
      %368 = vmatpush1.bf16.msra.mxu0 0
      %369 = vmatprep.mubr.bf16.mxu0 0
      %370 = vmatmul.mubr.bf16.gmra.mrb[0].mxu0 %v265
      %v371 = vpop.f32.mrb[0].mxu0
      %v372 = vadd.f32 %v287, %v371
      %v373 = vpop.f32.mrb[0].mxu0
      %v374 = vpop.f32.mrb[0].mxu0
      %v375 = vpop.f32.mrb[0].mxu0
      %376 = vdwg.mxu0
      %v377 = vmax.f32 %v372, 0.0
      %v378 = vpack.c.bf16 %v377, %v377
      %v379 = vld [vmem:[#allocation9] sm:$0xf]
      %v380 = vld [vmem:[#allocation9 + $0x4] sm:$0xf]
      %v381 = vld [vmem:[#allocation9 + $0x8] sm:$0xf]
      %v382 = vld [vmem:[#allocation9 + $0xc] sm:$0xf]
      %v383 = vld [vmem:[#allocation9 + $0x10] sm:$0xf]
      %v384 = vld [vmem:[#allocation9 + $0x14] sm:$0xf]
      %v385 = vld [vmem:[#allocation9 + $0x18] sm:$0xf]
      %v386 = vld [vmem:[#allocation9 + $0x1c] sm:$0xf]
      %v387 = vld [vmem:[#allocation9 + $0x20] sm:$0xf]
      %v388 = vld [vmem:[#allocation9 + $0x24] sm:$0xf]
      %v389 = vld [vmem:[#allocation9 + $0x28] sm:$0xf]
      %v390 = vld [vmem:[#allocation9 + $0x2c] sm:$0xf]
      %v391 = vld [vmem:[#allocation9 + $0x30] sm:$0xf]
      %v392 = vld [vmem:[#allocation9 + $0x34] sm:$0xf]
      %v393 = vld [vmem:[#allocation9 + $0x38] sm:$0xf]
      %v394 = vld [vmem:[#allocation9 + $0x3c] sm:$0xf]
      %v395 = vld [vmem:[%s8] sm:$0x1]
      %v397 = vlaneseq
      %v398 = vshrl.u32 %v397, 7
      %v399 = vsub.s32 0, %v398
      %v400 = vrot.slane %v395, %v399
      %v418 = vunpack.c.l.b16 %v379
      %v419 = vunpack.c.l.b16 %v380
      %v420 = vunpack.c.l.b16 %v381
      %v421 = vunpack.c.l.b16 %v382
      %v422 = vunpack.c.l.b16 %v383
      %v423 = vunpack.c.l.b16 %v384
      %v424 = vunpack.c.l.b16 %v385
      %v425 = vunpack.c.l.b16 %v386
      %v426 = vunpack.c.l.b16 %v387
      %v427 = vunpack.c.l.b16 %v388
      %v428 = vunpack.c.l.b16 %v389
      %v429 = vunpack.c.l.b16 %v390
      %v430 = vunpack.c.l.b16 %v391
      %v431 = vunpack.c.l.b16 %v392
      %v432 = vunpack.c.l.b16 %v393
      %v433 = vunpack.c.l.b16 %v394
      %v434 = vpack.c.b16 %v419, %v418
      %v435 = vpack.c.b16 %v421, %v420
      %v436 = vpack.c.b16 %v423, %v422
      %v437 = vpack.c.b16 %v425, %v424
      %v438 = vpack.c.b16 %v427, %v426
      %v439 = vpack.c.b16 %v429, %v428
      %v440 = vpack.c.b16 %v431, %v430
      %v441 = vpack.c.b16 %v433, %v432
      %450 = vmatprep.subr.bf16.mxu0 0
      %451 = vmatpush1.bf16.msra.mxu0 %v434
      %452 = vmatprep.subr.bf16.mxu0 0
      %453 = vmatpush1.bf16.msra.mxu0 %v435
      %454 = vmatprep.subr.bf16.mxu0 0
      %455 = vmatpush1.bf16.msra.mxu0 %v436
      %456 = vmatprep.subr.bf16.mxu0 0
      %457 = vmatpush1.bf16.msra.mxu0 %v437
      %458 = vmatprep.subr.bf16.mxu0 0
      %459 = vmatpush1.bf16.msra.mxu0 %v438
      %460 = vmatprep.subr.bf16.mxu0 0
      %461 = vmatpush1.bf16.msra.mxu0 %v439
      %462 = vmatprep.subr.bf16.mxu0 0
      %463 = vmatpush1.bf16.msra.mxu0 %v440
      %464 = vmatprep.subr.bf16.mxu0 0
      %465 = vmatpush1.bf16.msra.mxu0 %v441
      %466 = vmatprep.subr.bf16.mxu0 0
      %467 = vmatpush1.bf16.msra.mxu0 0
      %468 = vmatprep.subr.bf16.mxu0 0
      %469 = vmatpush1.bf16.msra.mxu0 0
      %470 = vmatprep.subr.bf16.mxu0 0
      %471 = vmatpush1.bf16.msra.mxu0 0
      %472 = vmatprep.subr.bf16.mxu0 0
      %473 = vmatpush1.bf16.msra.mxu0 0
      %474 = vmatprep.subr.bf16.mxu0 0
      %475 = vmatpush1.bf16.msra.mxu0 0
      %476 = vmatprep.subr.bf16.mxu0 0
      %477 = vmatpush1.bf16.msra.mxu0 0
      %478 = vmatprep.subr.bf16.mxu0 0
      %479 = vmatpush1.bf16.msra.mxu0 0
      %480 = vmatprep.subr.bf16.mxu0 0
      %481 = vmatpush1.bf16.msra.mxu0 0
      %482 = vmatprep.mubr.bf16.mxu0 0
      %483 = vmatmul.mubr.bf16.gmra.mrb[0].mxu0 %v378
      %v484 = vpop.f32.mrb[0].mxu0
      %v485 = vadd.f32 %v400, %v484
      %v486 = vpop.f32.mrb[0].mxu0
      %v487 = vpop.f32.mrb[0].mxu0
      %v488 = vpop.f32.mrb[0].mxu0
      %489 = vdwg.mxu0
      %v490 = vmax.f32 %v485, 0.0
      %v491 = vpack.c.bf16 %v490, %v490
      %v492 = vld [vmem:[#allocation11] sm:$0xf]
      %v493 = vld [vmem:[#allocation11 + $0x4] sm:$0xf]
      %v494 = vld [vmem:[#allocation11 + $0x8] sm:$0xf]
      %v495 = vld [vmem:[#allocation11 + $0xc] sm:$0xf]
      %v496 = vld [vmem:[#allocation11 + $0x10] sm:$0xf]
      %v497 = vld [vmem:[#allocation11 + $0x14] sm:$0xf]
      %v498 = vld [vmem:[#allocation11 + $0x18] sm:$0xf]
      %v499 = vld [vmem:[#allocation11 + $0x1c] sm:$0xf]
      %v500 = vld [vmem:[#allocation11 + $0x20] sm:$0xf]
      %v501 = vld [vmem:[#allocation11 + $0x24] sm:$0xf]
      %v502 = vld [vmem:[#allocation11 + $0x28] sm:$0xf]
      %v503 = vld [vmem:[#allocation11 + $0x2c] sm:$0xf]
      %v504 = vld [vmem:[#allocation11 + $0x30] sm:$0xf]
      %v505 = vld [vmem:[#allocation11 + $0x34] sm:$0xf]
      %v506 = vld [vmem:[#allocation11 + $0x38] sm:$0xf]
      %v507 = vld [vmem:[#allocation11 + $0x3c] sm:$0xf]
      %v508 = vld [vmem:[%s10] sm:$0x1]
      %v510 = vlaneseq
      %v511 = vshrl.u32 %v510, 7
      %v512 = vsub.s32 0, %v511
      %v513 = vrot.slane %v508, %v512
      %v531 = vunpack.c.l.b16 %v492
      %v532 = vunpack.c.l.b16 %v493
      %v533 = vunpack.c.l.b16 %v494
      %v534 = vunpack.c.l.b16 %v495
      %v535 = vunpack.c.l.b16 %v496
      %v536 = vunpack.c.l.b16 %v497
      %v537 = vunpack.c.l.b16 %v498
      %v538 = vunpack.c.l.b16 %v499
      %v539 = vunpack.c.l.b16 %v500
      %v540 = vunpack.c.l.b16 %v501
      %v541 = vunpack.c.l.b16 %v502
      %v542 = vunpack.c.l.b16 %v503
      %v543 = vunpack.c.l.b16 %v504
      %v544 = vunpack.c.l.b16 %v505
      %v545 = vunpack.c.l.b16 %v506
      %v546 = vunpack.c.l.b16 %v507
      %v547 = vpack.c.b16 %v532, %v531
      %v548 = vpack.c.b16 %v534, %v533
      %v549 = vpack.c.b16 %v536, %v535
      %v550 = vpack.c.b16 %v538, %v537
      %v551 = vpack.c.b16 %v540, %v539
      %v552 = vpack.c.b16 %v542, %v541
      %v553 = vpack.c.b16 %v544, %v543
      %v554 = vpack.c.b16 %v546, %v545
      %563 = vmatprep.subr.bf16.mxu0 0
      %564 = vmatpush1.bf16.msra.mxu0 %v547
      %565 = vmatprep.subr.bf16.mxu0 0
      %566 = vmatpush1.bf16.msra.mxu0 %v548
      %567 = vmatprep.subr.bf16.mxu0 0
      %568 = vmatpush1.bf16.msra.mxu0 %v549
      %569 = vmatprep.subr.bf16.mxu0 0
      %570 = vmatpush1.bf16.msra.mxu0 %v550
      %571 = vmatprep.subr.bf16.mxu0 0
      %572 = vmatpush1.bf16.msra.mxu0 %v551
      %573 = vmatprep.subr.bf16.mxu0 0
      %574 = vmatpush1.bf16.msra.mxu0 %v552
      %575 = vmatprep.subr.bf16.mxu0 0
      %576 = vmatpush1.bf16.msra.mxu0 %v553
      %577 = vmatprep.subr.bf16.mxu0 0
      %578 = vmatpush1.bf16.msra.mxu0 %v554
      %579 = vmatprep.subr.bf16.mxu0 0
      %580 = vmatpush1.bf16.msra.mxu0 0
      %581 = vmatprep.subr.bf16.mxu0 0
      %582 = vmatpush1.bf16.msra.mxu0 0
      %583 = vmatprep.subr.bf16.mxu0 0
      %584 = vmatpush1.bf16.msra.mxu0 0
      %585 = vmatprep.subr.bf16.mxu0 0
      %586 = vmatpush1.bf16.msra.mxu0 0
      %587 = vmatprep.subr.bf16.mxu0 0
      %588 = vmatpush1.bf16.msra.mxu0 0
      %589 = vmatprep.subr.bf16.mxu0 0
      %590 = vmatpush1.bf16.msra.mxu0 0
      %591 = vmatprep.subr.bf16.mxu0 0
      %592 = vmatpush1.bf16.msra.mxu0 0
      %593 = vmatprep.subr.bf16.mxu0 0
      %594 = vmatpush1.bf16.msra.mxu0 0
      %595 = vmatprep.mubr.bf16.mxu0 0
      %596 = vmatmul.mubr.bf16.gmra.mrb[0].mxu0 %v491
      %v597 = vpop.f32.mrb[0].mxu0
      %v598 = vadd.f32 %v513, %v597
      %v599 = vpop.f32.mrb[0].mxu0
      %v600 = vpop.f32.mrb[0].mxu0
      %v601 = vpop.f32.mrb[0].mxu0
      %602 = vdwg.mxu0
      %v603 = vtanh.pop %v598
      %604 = vst [vmem:[#allocation12] sm:$0xff] %v603
    $region73: #{tpu_custom_call.1} parent=1 // pred_fallthru
      _
    // Predicated region
    $region74: #{tpu_custom_call.1} parent=1 // pred_check
      _
    $region75: #{tpu_custom_call.1} parent=1 // pred_check_branch
      %606 = sbr.rel (0) target = $region77
    $region76: #{tpu_custom_call.1} parent=1 // pred_region
      %s608 = ssub.s32 128, 128
      %609 = vsyncadd [#allocation5], %s608
      %s611 = sshll.u32 [#allocation12], 4
      %s612 = int_to_ptr.vmem [resolvable:$true] %s611
      %614 = dma.vmem_to_hbm [thread:$0]  %s612, 128, %s11, [#allocation5]
    $region77: #{tpu_custom_call.1} parent=1 // pred_fallthru
      _
    // Predicated region
    $region78: #{tpu_custom_call.1} parent=1 // pred_check
      _
    $region79: #{tpu_custom_call.1} parent=1 // pred_check_branch
      %616 = sbr.rel (0) target = $region81
    $region80: #{tpu_custom_call.1} parent=1 // pred_region
      %617 = dma.done [#allocation5], 128
    $region81: #{tpu_custom_call.1} parent=1 // pred_fallthru
      _
    %618 = vsyncpa [#allocation4], 1
    %619 = vsyncpa [#allocation7], 1
    %620 = vsyncpa [#allocation10], 1
    %621 = vsyncpa [#allocation5], 1

// kernel: tpu_custom_call.1
$region0: #{tpu_custom_call.1}
  #allocation0 [shape = 'u32[]', space=smem, size = 0x4, offset = 0x4, fixed_abs, tag = 'smem constant byte address 0x4 - core index']
  #allocation1 [shape = 'u32[144,128]{1,0:T(1,128)}', space=vmem, size = 0x12000, scoped, tag = 'internal scratch']
  #allocation2 [shape = 'f32[8,128]{1,0:T(8,128)}', space=vmem, size = 0x1000, scoped, tag = 'scratch operand']
  %s0 = inlined_call_operand.hbm [shape: bf16[8,128], index: 0, kind: input, shape index: {}]
  %s1 = inlined_call_operand.hbm [shape: bf16[128,128], index: 1, kind: input, shape index: {}]
  %s2 = inlined_call_operand.vmem [shape: f32[1,128], index: 2, kind: input, shape index: {}]
  %s3 = inlined_call_operand.vmem [shape: f32[1,128], index: 3, kind: input, shape index: {}]
  %s4 = inlined_call_operand.vmem [shape: f32[1,128], index: 4, kind: input, shape index: {}]
  %s5 = inlined_call_operand.hbm [shape: bf16[128,128], index: 5, kind: input, shape index: {}]
  %s6 = inlined_call_operand.vmem [shape: f32[1,128], index: 6, kind: input, shape index: {}]
  %s7 = inlined_call_operand.hbm [shape: bf16[128,128], index: 7, kind: input, shape index: {}]
  %s8 = inlined_call_operand.vmem [shape: f32[1,128], index: 8, kind: input, shape index: {}]
  %s9 = inlined_call_operand.hbm [shape: bf16[128,128], index: 9, kind: input, shape index: {}]
  %s10 = inlined_call_operand.vmem [shape: f32[1,128], index: 10, kind: input, shape index: {}]
  %s11 = inlined_call_operand.hbm [shape: f32[8,128], index: 11, kind: output, shape index: {}]
  %s12 = sld [smem:[#allocation0]]
  $region82: #{tpu_custom_call.1} parent=0
    _
  %s14 = ssub.s32 1, %s12
  %s15 = scalar_select 0, %s14, %s12
  $region1: #{tpu_custom_call.1} parent=0
    #allocation3 [shape = 'u8[2048]{0}', space=vmem, size = 0x800, scoped, tag = 'input window, operand 0, single buffered']
    #allocation4 [shape = 's32[1]{0}', space=sflag, size = 0x4, scoped, tag = 'scoped memory for tpu_custom_call.1']
    #allocation5 [shape = 's32[1]{0}', space=sflag, size = 0x4, scoped, tag = 'scoped memory for tpu_custom_call.1']
    #allocation6 [shape = 'u8[32768]{0}', space=vmem, size = 0x8000, scoped, tag = 'input window, operand 1, single buffered']
    #allocation7 [shape = 's32[1]{0}', space=sflag, size = 0x4, scoped, tag = 'scoped memory for tpu_custom_call.1']
    #allocation8 [shape = 'u8[32768]{0}', space=vmem, size = 0x8000, scoped, tag = 'input window, operand 5, single buffered']
    #allocation9 [shape = 'u8[32768]{0}', space=vmem, size = 0x8000, scoped, tag = 'input window, operand 7, single buffered']
    #allocation10 [shape = 's32[1]{0}', space=sflag, size = 0x4, scoped, tag = 'scoped memory for tpu_custom_call.1']
    #allocation11 [shape = 'u8[32768]{0}', space=vmem, size = 0x8000, scoped, tag = 'input window, operand 9, single buffered']
    #allocation12 [shape = 'u8[4096]{0}', space=vmem, size = 0x1000, scoped, tag = 'output window, operand 0, single buffered']
    %16 = vsyncpa [#allocation4], 0
    %17 = vsyncpa [#allocation7], 0
    %18 = vsyncpa [#allocation10], 0
    %19 = vsyncpa [#allocation5], 0
    // Predicated region
    $region2: #{tpu_custom_call.1} parent=1 // pred_check
      _
    $region3: #{tpu_custom_call.1} parent=1 // pred_check_branch
      %21 = sbr.rel (0) target = $region5
    $region4: #{tpu_custom_call.1} parent=1 // pred_region
      %s23 = ssub.s32 64, 64
      %24 = vsyncadd [#allocation4], %s23
      %s26 = sshll.u32 [#allocation3], 4
      %s27 = int_to_ptr.vmem [resolvable:$true] %s26
      %29 = dma.hbm_to_vmem [thread:$0]  %s0, 64, %s27, [#allocation4]
    $region5: #{tpu_custom_call.1} parent=1 // pred_fallthru
      _
    // Predicated region
    $region6: #{tpu_custom_call.1} parent=1 // pred_check
      _
    $region7: #{tpu_custom_call.1} parent=1 // pred_check_branch
      %31 = sbr.rel (0) target = $region9
    $region8: #{tpu_custom_call.1} parent=1 // pred_region
      %s33 = ssub.s32 1024, 1024
      %34 = vsyncadd [#allocation7], %s33
      %s35 = sshll.u32 [#allocation6], 4
      %s36 = int_to_ptr.vmem [resolvable:$true] %s35
      %41 = dma.hbm_to_vmem [thread:$0]  %s1, 1024, %s36, [#allocation7], 64, 64, 4
    $region9: #{tpu_custom_call.1} parent=1 // pred_fallthru
      _
    // Predicated region
    $region10: #{tpu_custom_call.1} parent=1 // pred_check
      _
    $region11: #{tpu_custom_call.1} parent=1 // pred_check_branch
      %43 = sbr.rel (0) target = $region13
    $region12: #{tpu_custom_call.1} parent=1 // pred_region
      _
    $region13: #{tpu_custom_call.1} parent=1 // pred_fallthru
      _
    // Predicated region
    $region14: #{tpu_custom_call.1} parent=1 // pred_check
      _
    $region15: #{tpu_custom_call.1} parent=1 // pred_check_branch
      %45 = sbr.rel (0) target = $region17
    $region16: #{tpu_custom_call.1} parent=1 // pred_region
      _
    $region17: #{tpu_custom_call.1} parent=1 // pred_fallthru
      _
    // Predicated region
    $region18: #{tpu_custom_call.1} parent=1 // pred_check
      _
    $region19: #{tpu_custom_call.1} parent=1 // pred_check_branch
      %47 = sbr.rel (0) target = $region21
    $region20: #{tpu_custom_call.1} parent=1 // pred_region
      _
    $region21: #{tpu_custom_call.1} parent=1 // pred_fallthru
      _
    // Predicated region
    $region22: #{tpu_custom_call.1} parent=1 // pred_check
      _
    $region23: #{tpu_custom_call.1} parent=1 // pred_check_branch
      %49 = sbr.rel (0) target = $region25
    $region24: #{tpu_custom_call.1} parent=1 // pred_region
      %s51 = ssub.s32 1024, 1024
      %52 = vsyncadd [#allocation7], %s51
      %s53 = sshll.u32 [#allocation8], 4
      %s54 = int_to_ptr.vmem [resolvable:$true] %s53
      %59 = dma.hbm_to_vmem [thread:$0]  %s5, 1024, %s54, [#allocation7], 64, 64, 4
    $region25: #{tpu_custom_call.1} parent=1 // pred_fallthru
      _
    // Predicated region
    $region26: #{tpu_custom_call.1} parent=1 // pred_check
      _
    $region27: #{tpu_custom_call.1} parent=1 // pred_check_branch
      %61 = sbr.rel (0) target = $region29
    $region28: #{tpu_custom_call.1} parent=1 // pred_region
      _
    $region29: #{tpu_custom_call.1} parent=1 // pred_fallthru
      _
    // Predicated region
    $region30: #{tpu_custom_call.1} parent=1 // pred_check
      _
    $region31: #{tpu_custom_call.1} parent=1 // pred_check_branch
      %63 = sbr.rel (0) target = $region33
    $region32: #{tpu_custom_call.1} parent=1 // pred_region
      %s65 = ssub.s32 1024, 1024
      %66 = vsyncadd [#allocation10], %s65
      %s67 = sshll.u32 [#allocation9], 4
      %s68 = int_to_ptr.vmem [resolvable:$true] %s67
      %73 = dma.hbm_to_vmem [thread:$0]  %s7, 1024, %s68, [#allocation10], 64, 64, 4
    $region33: #{tpu_custom_call.1} parent=1 // pred_fallthru
      _
    // Predicated region
    $region34: #{tpu_custom_call.1} parent=1 // pred_check
      _
    $region35: #{tpu_custom_call.1} parent=1 // pred_check_branch
      %75 = sbr.rel (0) target = $region37
    $region36: #{tpu_custom_call.1} parent=1 // pred_region
      _
    $region37: #{tpu_custom_call.1} parent=1 // pred_fallthru
      _
    // Predicated region
    $region38: #{tpu_custom_call.1} parent=1 // pred_check
      _
    $region39: #{tpu_custom_call.1} parent=1 // pred_check_branch
      %77 = sbr.rel (0) target = $region41
    $region40: #{tpu_custom_call.1} parent=1 // pred_region
      %s79 = ssub.s32 1024, 1024
      %80 = vsyncadd [#allocation10], %s79
      %s81 = sshll.u32 [#allocation11], 4
      %s82 = int_to_ptr.vmem [resolvable:$true] %s81
      %87 = dma.hbm_to_vmem [thread:$0]  %s9, 1024, %s82, [#allocation10], 64, 64, 4
    $region41: #{tpu_custom_call.1} parent=1 // pred_fallthru
      _
    // Predicated region
    $region42: #{tpu_custom_call.1} parent=1 // pred_check
      _
    $region43: #{tpu_custom_call.1} parent=1 // pred_check_branch
      %89 = sbr.rel (0) target = $region45
    $region44: #{tpu_custom_call.1} parent=1 // pred_region
      _
    $region45: #{tpu_custom_call.1} parent=1 // pred_fallthru
      _
    // Predicated region
    $region46: #{tpu_custom_call.1} parent=1 // pred_check
      _
    $region47: #{tpu_custom_call.1} parent=1 // pred_check_branch
      %91 = sbr.rel (0) target = $region49
    $region48: #{tpu_custom_call.1} parent=1 // pred_region
      %92 = dma.done [#allocation4], 64
    $region49: #{tpu_custom_call.1} parent=1 // pred_fallthru
      _
    // Predicated region
    $region50: #{tpu_custom_call.1} parent=1 // pred_check
      _
    $region51: #{tpu_custom_call.1} parent=1 // pred_check_branch
      %94 = sbr.rel (0) target = $region53
    $region52: #{tpu_custom_call.1} parent=1 // pred_region
      %95 = dma.done [#allocation7], 1024
    $region53: #{tpu_custom_call.1} parent=1 // pred_fallthru
      _
    // Predicated region
    $region54: #{tpu_custom_call.1} parent=1 // pred_check
      _
    $region55: #{tpu_custom_call.1} parent=1 // pred_check_branch
      %97 = sbr.rel (0) target = $region57
    $region56: #{tpu_custom_call.1} parent=1 // pred_region
      %98 = dma.done [#allocation7], 1024
    $region57: #{tpu_custom_call.1} parent=1 // pred_fallthru
      _
    // Predicated region
    $region58: #{tpu_custom_call.1} parent=1 // pred_check
      _
    $region59: #{tpu_custom_call.1} parent=1 // pred_check_branch
      %100 = sbr.rel (0) target = $region61
    $region60: #{tpu_custom_call.1} parent=1 // pred_region
      %101 = dma.done [#allocation10], 1024
    $region61: #{tpu_custom_call.1} parent=1 // pred_fallthru
      _
    // Predicated region
    $region62: #{tpu_custom_call.1} parent=1 // pred_check
      _
    $region63: #{tpu_custom_call.1} parent=1 // pred_check_branch
      %103 = sbr.rel (0) target = $region65
    $region64: #{tpu_custom_call.1} parent=1 // pred_region
      %104 = dma.done [#allocation10], 1024
    $region65: #{tpu_custom_call.1} parent=1 // pred_fallthru
      _
    %p106 = scmp.eq.s32.totalorder 0, 0
    // Predicated region
    $region66: #{tpu_custom_call.1} parent=1 // pred_check
      %p107 = pneg %p106
    $region67: #{tpu_custom_call.1} parent=1 // pred_check_branch
      %109 = sbr.rel (%p107) target = $region69
    $region68: #{tpu_custom_call.1} parent=1 // pred_region
      %110 = vst [vmem:[#allocation2] sm:$0xff] 0.0
    $region69: #{tpu_custom_call.1} parent=1 // pred_fallthru
      _
    %v111 = vld [vmem:[#allocation2] sm:$0xff]
    %v112 = vld [vmem:[#allocation3] sm:$0xf]
    %v113 = vld [vmem:[#allocation6] sm:$0xf]
    %v114 = vld [vmem:[#allocation6 + $0x4] sm:$0xf]
    %v115 = vld [vmem:[#allocation6 + $0x8] sm:$0xf]
    %v116 = vld [vmem:[#allocation6 + $0xc] sm:$0xf]
    %v117 = vld [vmem:[#allocation6 + $0x10] sm:$0xf]
    %v118 = vld [vmem:[#allocation6 + $0x14] sm:$0xf]
    %v119 = vld [vmem:[#allocation6 + $0x18] sm:$0xf]
    %v120 = vld [vmem:[#allocation6 + $0x1c] sm:$0xf]
    %v121 = vld [vmem:[#allocation6 + $0x20] sm:$0xf]
    %v122 = vld [vmem:[#allocation6 + $0x24] sm:$0xf]
    %v123 = vld [vmem:[#allocation6 + $0x28] sm:$0xf]
    %v124 = vld [vmem:[#allocation6 + $0x2c] sm:$0xf]
    %v125 = vld [vmem:[#allocation6 + $0x30] sm:$0xf]
    %v126 = vld [vmem:[#allocation6 + $0x34] sm:$0xf]
    %v127 = vld [vmem:[#allocation6 + $0x38] sm:$0xf]
    %v128 = vld [vmem:[#allocation6 + $0x3c] sm:$0xf]
    %v145 = vunpack.c.l.b16 %v113
    %v146 = vunpack.c.l.b16 %v114
    %v147 = vunpack.c.l.b16 %v115
    %v148 = vunpack.c.l.b16 %v116
    %v149 = vunpack.c.l.b16 %v117
    %v150 = vunpack.c.l.b16 %v118
    %v151 = vunpack.c.l.b16 %v119
    %v152 = vunpack.c.l.b16 %v120
    %v153 = vunpack.c.l.b16 %v121
    %v154 = vunpack.c.l.b16 %v122
    %v155 = vunpack.c.l.b16 %v123
    %v156 = vunpack.c.l.b16 %v124
    %v157 = vunpack.c.l.b16 %v125
    %v158 = vunpack.c.l.b16 %v126
    %v159 = vunpack.c.l.b16 %v127
    %v160 = vunpack.c.l.b16 %v128
    %v161 = vpack.c.b16 %v146, %v145
    %v162 = vpack.c.b16 %v148, %v147
    %v163 = vpack.c.b16 %v150, %v149
    %v164 = vpack.c.b16 %v152, %v151
    %v165 = vpack.c.b16 %v154, %v153
    %v166 = vpack.c.b16 %v156, %v155
    %v167 = vpack.c.b16 %v158, %v157
    %v168 = vpack.c.b16 %v160, %v159
    %177 = vmatprep.subr.bf16.mxu0 0
    %178 = vmatpush1.bf16.msra.mxu0 %v161
    %179 = vmatprep.subr.bf16.mxu0 0
    %180 = vmatpush1.bf16.msra.mxu0 %v162
    %181 = vmatprep.subr.bf16.mxu0 0
    %182 = vmatpush1.bf16.msra.mxu0 %v163
    %183 = vmatprep.subr.bf16.mxu0 0
    %184 = vmatpush1.bf16.msra.mxu0 %v164
    %185 = vmatprep.subr.bf16.mxu0 0
    %186 = vmatpush1.bf16.msra.mxu0 %v165
    %187 = vmatprep.subr.bf16.mxu0 0
    %188 = vmatpush1.bf16.msra.mxu0 %v166
    %189 = vmatprep.subr.bf16.mxu0 0
    %190 = vmatpush1.bf16.msra.mxu0 %v167
    %191 = vmatprep.subr.bf16.mxu0 0
    %192 = vmatpush1.bf16.msra.mxu0 %v168
    %193 = vmatprep.subr.bf16.mxu0 0
    %194 = vmatpush1.bf16.msra.mxu0 0
    %195 = vmatprep.subr.bf16.mxu0 0
    %196 = vmatpush1.bf16.msra.mxu0 0
    %197 = vmatprep.subr.bf16.mxu0 0
    %198 = vmatpush1.bf16.msra.mxu0 0
    %199 = vmatprep.subr.bf16.mxu0 0
    %200 = vmatpush1.bf16.msra.mxu0 0
    %201 = vmatprep.subr.bf16.mxu0 0
    %202 = vmatpush1.bf16.msra.mxu0 0
    %203 = vmatprep.subr.bf16.mxu0 0
    %204 = vmatpush1.bf16.msra.mxu0 0
    %205 = vmatprep.subr.bf16.mxu0 0
    %206 = vmatpush1.bf16.msra.mxu0 0
    %207 = vmatprep.subr.bf16.mxu0 0
    %208 = vmatpush1.bf16.msra.mxu0 0
    %209 = vmatprep.mubr.bf16.mxu0 0
    %210 = vmatmul.mubr.bf16.gmra.mrb[0].mxu0 %v112
    %v211 = vpop.f32.mrb[0].mxu0
    %v212 = vadd.f32 0.0, %v211
    %v213 = vpop.f32.mrb[0].mxu0
    %v214 = vpop.f32.mrb[0].mxu0
    %v215 = vpop.f32.mrb[0].mxu0
    %216 = vdwg.mxu0
    %v217 = vadd.f32 %v111, %v212
    %218 = vst [vmem:[#allocation2] sm:$0xff] %v217
    // Predicated region
    $region70: #{tpu_custom_call.1} parent=1 // pred_check
      %p219 = pneg %p106
    $region71: #{tpu_custom_call.1} parent=1 // pred_check_branch
      %221 = sbr.rel (%p219) target = $region73
    $region72: #{tpu_custom_call.1} parent=1 // pred_region
      %v222 = vld [vmem:[#allocation2] sm:$0xff]
      %v223 = vld [vmem:[%s2] sm:$0x1]
      %v225 = vlaneseq
      %v226 = vshrl.u32 %v225, 7
      %v227 = vsub.s32 0, %v226
      %v228 = vrot.slane %v223, %v227
      %v230 = vadd.f32 %v222, %v228
      %v231 = vlaneseq
      %v232 = vand.u32 %v231, 127
      %vm233 = vcmp.lt.s32.totalorder %v232, 32
      %v234 = vsel %vm233, 1, 0
      %v235 = vcvt.s32.f32 %v234
      %236 = vadd.xlane.f32.xlu0 %v230
      %v237 = vpop.xlane.xlu0 %236
      %v238 = vmul.f32 %v237, 0.03125
      %v239 = vsub.f32 %v230, %v238
      %v240 = vmul.f32 %v239, %v235
      %v241 = vmul.f32 %v240, %v240
      %242 = vadd.xlane.f32.xlu0 %v241
      %v243 = vpop.xlane.xlu0 %242
      %v244 = vmul.f32 %v243, 0.03125
      %v245 = vadd.f32 %v244, 1e-05
      %v246 = vrsqrt.pop %v245
      %v247 = vmul.f32 %v240, %v246
      %v248 = vld [vmem:[%s3] sm:$0x1]
      %v250 = vlaneseq
      %v251 = vshrl.u32 %v250, 7
      %v252 = vsub.s32 0, %v251
      %v253 = vrot.slane %v248, %v252
      %v255 = vmul.f32 %v247, %v253
      %v256 = vld [vmem:[%s4] sm:$0x1]
      %v258 = vlaneseq
      %v259 = vshrl.u32 %v258, 7
      %v260 = vsub.s32 0, %v259
      %v261 = vrot.slane %v256, %v260
      %v263 = vadd.f32 %v255, %v261
      %v264 = vtanh.pop %v263
      %v265 = vpack.c.bf16 %v264, %v264
      %v266 = vld [vmem:[#allocation8] sm:$0xf]
      %v267 = vld [vmem:[#allocation8 + $0x4] sm:$0xf]
      %v268 = vld [vmem:[#allocation8 + $0x8] sm:$0xf]
      %v269 = vld [vmem:[#allocation8 + $0xc] sm:$0xf]
      %v270 = vld [vmem:[#allocation8 + $0x10] sm:$0xf]
      %v271 = vld [vmem:[#allocation8 + $0x14] sm:$0xf]
      %v272 = vld [vmem:[#allocation8 + $0x18] sm:$0xf]
      %v273 = vld [vmem:[#allocation8 + $0x1c] sm:$0xf]
      %v274 = vld [vmem:[#allocation8 + $0x20] sm:$0xf]
      %v275 = vld [vmem:[#allocation8 + $0x24] sm:$0xf]
      %v276 = vld [vmem:[#allocation8 + $0x28] sm:$0xf]
      %v277 = vld [vmem:[#allocation8 + $0x2c] sm:$0xf]
      %v278 = vld [vmem:[#allocation8 + $0x30] sm:$0xf]
      %v279 = vld [vmem:[#allocation8 + $0x34] sm:$0xf]
      %v280 = vld [vmem:[#allocation8 + $0x38] sm:$0xf]
      %v281 = vld [vmem:[#allocation8 + $0x3c] sm:$0xf]
      %v282 = vld [vmem:[%s6] sm:$0x1]
      %v284 = vlaneseq
      %v285 = vshrl.u32 %v284, 7
      %v286 = vsub.s32 0, %v285
      %v287 = vrot.slane %v282, %v286
      %v305 = vunpack.c.l.b16 %v266
      %v306 = vunpack.c.l.b16 %v267
      %v307 = vunpack.c.l.b16 %v268
      %v308 = vunpack.c.l.b16 %v269
      %v309 = vunpack.c.l.b16 %v270
      %v310 = vunpack.c.l.b16 %v271
      %v311 = vunpack.c.l.b16 %v272
      %v312 = vunpack.c.l.b16 %v273
      %v313 = vunpack.c.l.b16 %v274
      %v314 = vunpack.c.l.b16 %v275
      %v315 = vunpack.c.l.b16 %v276
      %v316 = vunpack.c.l.b16 %v277
      %v317 = vunpack.c.l.b16 %v278
      %v318 = vunpack.c.l.b16 %v279
      %v319 = vunpack.c.l.b16 %v280
      %v320 = vunpack.c.l.b16 %v281
      %v321 = vpack.c.b16 %v306, %v305
      %v322 = vpack.c.b16 %v308, %v307
      %v323 = vpack.c.b16 %v310, %v309
      %v324 = vpack.c.b16 %v312, %v311
      %v325 = vpack.c.b16 %v314, %v313
      %v326 = vpack.c.b16 %v316, %v315
      %v327 = vpack.c.b16 %v318, %v317
      %v328 = vpack.c.b16 %v320, %v319
      %337 = vmatprep.subr.bf16.mxu0 0
      %338 = vmatpush1.bf16.msra.mxu0 %v321
      %339 = vmatprep.subr.bf16.mxu0 0
      %340 = vmatpush1.bf16.msra.mxu0 %v322
      %341 = vmatprep.subr.bf16.mxu0 0
      %342 = vmatpush1.bf16.msra.mxu0 %v323
      %343 = vmatprep.subr.bf16.mxu0 0
      %344 = vmatpush1.bf16.msra.mxu0 %v324
      %345 = vmatprep.subr.bf16.mxu0 0
      %346 = vmatpush1.bf16.msra.mxu0 %v325
      %347 = vmatprep.subr.bf16.mxu0 0
      %348 = vmatpush1.bf16.msra.mxu0 %v326
      %349 = vmatprep.subr.bf16.mxu0 0
      %350 = vmatpush1.bf16.msra.mxu0 %v327
      %351 = vmatprep.subr.bf16.mxu0 0
      %352 = vmatpush1.bf16.msra.mxu0 %v328
      %353 = vmatprep.subr.bf16.mxu0 0
      %354 = vmatpush1.bf16.msra.mxu0 0
      %355 = vmatprep.subr.bf16.mxu0 0
      %356 = vmatpush1.bf16.msra.mxu0 0
      %357 = vmatprep.subr.bf16.mxu0 0
      %358 = vmatpush1.bf16.msra.mxu0 0
      %359 = vmatprep.subr.bf16.mxu0 0
      %360 = vmatpush1.bf16.msra.mxu0 0
      %361 = vmatprep.subr.bf16.mxu0 0
      %362 = vmatpush1.bf16.msra.mxu0 0
      %363 = vmatprep.subr.bf16.mxu0 0
      %364 = vmatpush1.bf16.msra.mxu0 0
      %365 = vmatprep.subr.bf16.mxu0 0
      %366 = vmatpush1.bf16.msra.mxu0 0
      %367 = vmatprep.subr.bf16.mxu0 0
      %368 = vmatpush1.bf16.msra.mxu0 0
      %369 = vmatprep.mubr.bf16.mxu0 0
      %370 = vmatmul.mubr.bf16.gmra.mrb[0].mxu0 %v265
      %v371 = vpop.f32.mrb[0].mxu0
      %v372 = vadd.f32 %v287, %v371
      %v373 = vpop.f32.mrb[0].mxu0
      %v374 = vpop.f32.mrb[0].mxu0
      %v375 = vpop.f32.mrb[0].mxu0
      %376 = vdwg.mxu0
      %v377 = vmax.f32 %v372, 0.0
      %v378 = vpack.c.bf16 %v377, %v377
      %v379 = vld [vmem:[#allocation9] sm:$0xf]
      %v380 = vld [vmem:[#allocation9 + $0x4] sm:$0xf]
      %v381 = vld [vmem:[#allocation9 + $0x8] sm:$0xf]
      %v382 = vld [vmem:[#allocation9 + $0xc] sm:$0xf]
      %v383 = vld [vmem:[#allocation9 + $0x10] sm:$0xf]
      %v384 = vld [vmem:[#allocation9 + $0x14] sm:$0xf]
      %v385 = vld [vmem:[#allocation9 + $0x18] sm:$0xf]
      %v386 = vld [vmem:[#allocation9 + $0x1c] sm:$0xf]
      %v387 = vld [vmem:[#allocation9 + $0x20] sm:$0xf]
      %v388 = vld [vmem:[#allocation9 + $0x24] sm:$0xf]
      %v389 = vld [vmem:[#allocation9 + $0x28] sm:$0xf]
      %v390 = vld [vmem:[#allocation9 + $0x2c] sm:$0xf]
      %v391 = vld [vmem:[#allocation9 + $0x30] sm:$0xf]
      %v392 = vld [vmem:[#allocation9 + $0x34] sm:$0xf]
      %v393 = vld [vmem:[#allocation9 + $0x38] sm:$0xf]
      %v394 = vld [vmem:[#allocation9 + $0x3c] sm:$0xf]
      %v395 = vld [vmem:[%s8] sm:$0x1]
      %v397 = vlaneseq
      %v398 = vshrl.u32 %v397, 7
      %v399 = vsub.s32 0, %v398
      %v400 = vrot.slane %v395, %v399
      %v418 = vunpack.c.l.b16 %v379
      %v419 = vunpack.c.l.b16 %v380
      %v420 = vunpack.c.l.b16 %v381
      %v421 = vunpack.c.l.b16 %v382
      %v422 = vunpack.c.l.b16 %v383
      %v423 = vunpack.c.l.b16 %v384
      %v424 = vunpack.c.l.b16 %v385
      %v425 = vunpack.c.l.b16 %v386
      %v426 = vunpack.c.l.b16 %v387
      %v427 = vunpack.c.l.b16 %v388
      %v428 = vunpack.c.l.b16 %v389
      %v429 = vunpack.c.l.b16 %v390
      %v430 = vunpack.c.l.b16 %v391
      %v431 = vunpack.c.l.b16 %v392
      %v432 = vunpack.c.l.b16 %v393
      %v433 = vunpack.c.l.b16 %v394
      %v434 = vpack.c.b16 %v419, %v418
      %v435 = vpack.c.b16 %v421, %v420
      %v436 = vpack.c.b16 %v423, %v422
      %v437 = vpack.c.b16 %v425, %v424
      %v438 = vpack.c.b16 %v427, %v426
      %v439 = vpack.c.b16 %v429, %v428
      %v440 = vpack.c.b16 %v431, %v430
      %v441 = vpack.c.b16 %v433, %v432
      %450 = vmatprep.subr.bf16.mxu0 0
      %451 = vmatpush1.bf16.msra.mxu0 %v434
      %452 = vmatprep.subr.bf16.mxu0 0
      %453 = vmatpush1.bf16.msra.mxu0 %v435
      %454 = vmatprep.subr.bf16.mxu0 0
      %455 = vmatpush1.bf16.msra.mxu0 %v436
      %456 = vmatprep.subr.bf16.mxu0 0
      %457 = vmatpush1.bf16.msra.mxu0 %v437
      %458 = vmatprep.subr.bf16.mxu0 0
      %459 = vmatpush1.bf16.msra.mxu0 %v438
      %460 = vmatprep.subr.bf16.mxu0 0
      %461 = vmatpush1.bf16.msra.mxu0 %v439
      %462 = vmatprep.subr.bf16.mxu0 0
      %463 = vmatpush1.bf16.msra.mxu0 %v440
      %464 = vmatprep.subr.bf16.mxu0 0
      %465 = vmatpush1.bf16.msra.mxu0 %v441
      %466 = vmatprep.subr.bf16.mxu0 0
      %467 = vmatpush1.bf16.msra.mxu0 0
      %468 = vmatprep.subr.bf16.mxu0 0
      %469 = vmatpush1.bf16.msra.mxu0 0
      %470 = vmatprep.subr.bf16.mxu0 0
      %471 = vmatpush1.bf16.msra.mxu0 0
      %472 = vmatprep.subr.bf16.mxu0 0
      %473 = vmatpush1.bf16.msra.mxu0 0
      %474 = vmatprep.subr.bf16.mxu0 0
      %475 = vmatpush1.bf16.msra.mxu0 0
      %476 = vmatprep.subr.bf16.mxu0 0
      %477 = vmatpush1.bf16.msra.mxu0 0
      %478 = vmatprep.subr.bf16.mxu0 0
      %479 = vmatpush1.bf16.msra.mxu0 0
      %480 = vmatprep.subr.bf16.mxu0 0
      %481 = vmatpush1.bf16.msra.mxu0 0
      %482 = vmatprep.mubr.bf16.mxu0 0
      %483 = vmatmul.mubr.bf16.gmra.mrb[0].mxu0 %v378
      %v484 = vpop.f32.mrb[0].mxu0
      %v485 = vadd.f32 %v400, %v484
      %v486 = vpop.f32.mrb[0].mxu0
      %v487 = vpop.f32.mrb[0].mxu0
      %v488 = vpop.f32.mrb[0].mxu0
      %489 = vdwg.mxu0
      %v490 = vmax.f32 %v485, 0.0
      %v491 = vpack.c.bf16 %v490, %v490
      %v492 = vld [vmem:[#allocation11] sm:$0xf]
      %v493 = vld [vmem:[#allocation11 + $0x4] sm:$0xf]
      %v494 = vld [vmem:[#allocation11 + $0x8] sm:$0xf]
      %v495 = vld [vmem:[#allocation11 + $0xc] sm:$0xf]
      %v496 = vld [vmem:[#allocation11 + $0x10] sm:$0xf]
      %v497 = vld [vmem:[#allocation11 + $0x14] sm:$0xf]
      %v498 = vld [vmem:[#allocation11 + $0x18] sm:$0xf]
      %v499 = vld [vmem:[#allocation11 + $0x1c] sm:$0xf]
      %v500 = vld [vmem:[#allocation11 + $0x20] sm:$0xf]
      %v501 = vld [vmem:[#allocation11 + $0x24] sm:$0xf]
      %v502 = vld [vmem:[#allocation11 + $0x28] sm:$0xf]
      %v503 = vld [vmem:[#allocation11 + $0x2c] sm:$0xf]
      %v504 = vld [vmem:[#allocation11 + $0x30] sm:$0xf]
      %v505 = vld [vmem:[#allocation11 + $0x34] sm:$0xf]
      %v506 = vld [vmem:[#allocation11 + $0x38] sm:$0xf]
      %v507 = vld [vmem:[#allocation11 + $0x3c] sm:$0xf]
      %v508 = vld [vmem:[%s10] sm:$0x1]
      %v510 = vlaneseq
      %v511 = vshrl.u32 %v510, 7
      %v512 = vsub.s32 0, %v511
      %v513 = vrot.slane %v508, %v512
      %v531 = vunpack.c.l.b16 %v492
      %v532 = vunpack.c.l.b16 %v493
      %v533 = vunpack.c.l.b16 %v494
      %v534 = vunpack.c.l.b16 %v495
      %v535 = vunpack.c.l.b16 %v496
      %v536 = vunpack.c.l.b16 %v497
      %v537 = vunpack.c.l.b16 %v498
      %v538 = vunpack.c.l.b16 %v499
      %v539 = vunpack.c.l.b16 %v500
      %v540 = vunpack.c.l.b16 %v501
      %v541 = vunpack.c.l.b16 %v502
      %v542 = vunpack.c.l.b16 %v503
      %v543 = vunpack.c.l.b16 %v504
      %v544 = vunpack.c.l.b16 %v505
      %v545 = vunpack.c.l.b16 %v506
      %v546 = vunpack.c.l.b16 %v507
      %v547 = vpack.c.b16 %v532, %v531
      %v548 = vpack.c.b16 %v534, %v533
      %v549 = vpack.c.b16 %v536, %v535
      %v550 = vpack.c.b16 %v538, %v537
      %v551 = vpack.c.b16 %v540, %v539
      %v552 = vpack.c.b16 %v542, %v541
      %v553 = vpack.c.b16 %v544, %v543
      %v554 = vpack.c.b16 %v546, %v545
      %563 = vmatprep.subr.bf16.mxu0 0
      %564 = vmatpush1.bf16.msra.mxu0 %v547
      %565 = vmatprep.subr.bf16.mxu0 0
      %566 = vmatpush1.bf16.msra.mxu0 %v548
      %567 = vmatprep.subr.bf16.mxu0 0
      %568 = vmatpush1.bf16.msra.mxu0 %v549
      %569 = vmatprep.subr.bf16.mxu0 0
      %570 = vmatpush1.bf16.msra.mxu0 %v550
      %571 = vmatprep.subr.bf16.mxu0 0
      %572 = vmatpush1.bf16.msra.mxu0 %v551
      %573 = vmatprep.subr.bf16.mxu0 0
      %574 = vmatpush1.bf16.msra.mxu0 %v552
      %575 = vmatprep.subr.bf16.mxu0 0
      %576 = vmatpush1.bf16.msra.mxu0 %v553
      %577 = vmatprep.subr.bf16.mxu0 0
      %578 = vmatpush1.bf16.msra.mxu0 %v554
      %579 = vmatprep.subr.bf16.mxu0 0
      %580 = vmatpush1.bf16.msra.mxu0 0
      %581 = vmatprep.subr.bf16.mxu0 0
      %582 = vmatpush1.bf16.msra.mxu0 0
      %583 = vmatprep.subr.bf16.mxu0 0
      %584 = vmatpush1.bf16.msra.mxu0 0
      %585 = vmatprep.subr.bf16.mxu0 0
      %586 = vmatpush1.bf16.msra.mxu0 0
      %587 = vmatprep.subr.bf16.mxu0 0
      %588 = vmatpush1.bf16.msra.mxu0 0
      %589 = vmatprep.subr.bf16.mxu0 0
      %590 = vmatpush1.bf16.msra.mxu0 0
      %591 = vmatprep.subr.bf16.mxu0 0
      %592 = vmatpush1.bf16.msra.mxu0 0
      %593 = vmatprep.subr.bf16.mxu0 0
      %594 = vmatpush1.bf16.msra.mxu0 0
      %595 = vmatprep.mubr.bf16.mxu0 0
      %596 = vmatmul.mubr.bf16.gmra.mrb[0].mxu0 %v491
      %v597 = vpop.f32.mrb[0].mxu0
      %v598 = vadd.f32 %v513, %v597
      %v599 = vpop.f32.mrb[0].mxu0
      %v600 = vpop.f32.mrb[0].mxu0
      %v601 = vpop.f32.mrb[0].mxu0
      %602 = vdwg.mxu0
      %v603 = vtanh.pop %v598
      %604 = vst [vmem:[#allocation12] sm:$0xff] %v603
    $region73: #{tpu_custom_call.1} parent=1 // pred_fallthru
      _
    // Predicated region
    $region74: #{tpu_custom_call.1} parent=1 // pred_check
      _
    $region75: #{tpu_custom_call.1} parent=1 // pred_check_branch
      %606 = sbr.rel (0) target = $region77
    $region76: #{tpu_custom_call.1} parent=1 // pred_region
      %s608 = ssub.s32 128, 128
      %609 = vsyncadd [#allocation5], %s608
      %s611 = sshll.u32 [#allocation12], 4
      %s612 = int_to_ptr.vmem [resolvable:$true] %s611
      %614 = dma.vmem_to_hbm [thread:$0]  %s612, 128, %s11, [#allocation5]
    $region77: #{tpu_custom_call.1} parent=1 // pred_fallthru
      _
    // Predicated region
    $region78: #{tpu_custom_call.1} parent=1 // pred_check
      _
    $region79: #{tpu_custom_call.1} parent=1 // pred_check_branch
      %616 = sbr.rel (0) target = $region81
    $region80: #{tpu_custom_call.1} parent=1 // pred_region
      %617 = dma.done [#allocation5], 128
    $region81: #{tpu_custom_call.1} parent=1 // pred_fallthru
      _
    %618 = vsyncpa [#allocation4], 1
    %619 = vsyncpa [#allocation7], 1
    %620 = vsyncpa [#allocation10], 1
    %621 = vsyncpa [#allocation5], 1

</llo_original>
